<compile_context>
chip_gen: v5e
topology: v5e:2x2
jax: 0.10.0
libtpu: 0.0.40
codegen_flags: <defaults>
</compile_context>

<pallas_src>
import math
import functools

import numpy as np
import jax
import jax.numpy as jnp
from jax.experimental import pallas as pl
from jax.experimental.pallas import tpu as pltpu  # noqa: F401  (imported per convention)


# ----------------------------- Pallas kernel --------------------------------

def _layernorm(x, w, b, eps=1e-5):
    mu = jnp.mean(x, axis=-1, keepdims=True)
    var = jnp.mean((x - mu) ** 2, axis=-1, keepdims=True)
    return (x - mu) * jax.lax.rsqrt(var + eps) * w + b


def fused_transformer_kernel(src_ref, tail_ref, attn_ref,
                             wqkv_ref, wo_ref, w1_ref, w2_ref,
                             small_ref, clswb_ref, o_ref, *, nlayers):
    """Entire TransformerClassifier forward for all rows (R = S*N) in one invocation."""
    f32, bf16 = jnp.float32, jnp.bfloat16
    R, E = src_ref.shape                       # R = S*N rows, E = d_model
    HR = attn_ref.shape[0]                     # nhead * R  (block-diagonal head packing)
    nhid = w1_ref.shape[2]
    S = o_ref.shape[0]

    # ---- layer-invariant constants: loaded / sliced / cast ONCE -------------
    tail = tail_ref[...]                       # (R, E + HR + R)
    attn_c = attn_ref[...]                     # (HR, 3E + HR + R)
    pe = tail[:, 0:E]                          # (R, E) positional encoding (row r -> pe[r // N])
    rept_bf = tail[:, E:E + HR].astype(bf16)   # (R, HR) collapse-over-heads matrix
    sel = tail[0:S, E + HR:E + HR + R]         # (S, R) picks rows (s, n = N-1)  == output[:, -1, :]
    head_mask = attn_c[:, 0:3 * E]             # (HR, 3E): per-head lane mask on K/V, ones on Q
    bias_bd = attn_c[:, 3 * E:3 * E + HR]      # (HR, HR): 0 same head & batch, -1e9 otherwise
    rep_bf = attn_c[:, 3 * E + HR:3 * E + HR + R].astype(bf16)   # (HR, R) row replication

    x = src_ref[...] + pe                      # (R, E) f32, rows ordered (s, n)

    for l in range(nlayers):                   # static unroll over layers
        sm = small_ref[l]                      # (8, 128): packed per-layer vectors (lane offset 0)
        bqkv = sm[0:1, 0:3 * E]
        bo = sm[1:2, 0:E]
        ln1w = sm[2:3, 0:E]
        ln1b = sm[3:4, 0:E]
        b1 = sm[4:5, 0:nhid]
        b2 = sm[5:6, 0:E]
        ln2w = sm[6:7, 0:E]
        ln2b = sm[7:8, 0:E]

        # ---- multi-head self-attention (heads packed block-diagonally on rows) ----
        xb = x.astype(bf16)
        x_rep = jnp.dot(rep_bf, xb, preferred_element_type=f32)                 # (HR, E)
        qkvb = jnp.dot(x_rep.astype(bf16), wqkv_ref[l],
                       preferred_element_type=f32) + bqkv                       # (HR, 3E)
        qkvb = qkvb * head_mask                # restrict K/V of row-block h to head-h lanes
        qb = qkvb[:, 0:E]                      # 1/sqrt(Dh) already folded into wqkv/bqkv
        kb = qkvb[:, E:2 * E]
        vb = qkvb[:, 2 * E:3 * E]

        s = jax.lax.dot_general(qb.astype(bf16), kb.astype(bf16),
                                (((1,), (1,)), ((), ())),
                                preferred_element_type=f32)                     # (HR, HR)
        s = s + bias_bd                        # kills cross-head and cross-batch attention
        s = s - jnp.max(s, axis=-1, keepdims=True)
        p = jnp.exp(s)
        p = p * pl.reciprocal(jnp.sum(p, axis=-1, keepdims=True), approx=True)

        ctxb = jnp.dot(p.astype(bf16), vb.astype(bf16),
                       preferred_element_type=f32)                              # (HR, E)
        ctx = jnp.dot(rept_bf, ctxb.astype(bf16),
                      preferred_element_type=f32)                               # (R, E) concat-of-heads
        attn = jnp.dot(ctx.astype(bf16), wo_ref[l],
                       preferred_element_type=f32) + bo
        # TODO(synk): dropout (p=0.1 pos-enc, p=0.5 encoder) is identity (eval semantics).
        x = _layernorm(x + attn, ln1w, ln1b)

        # ---- position-wise feed-forward ----
        h1 = jnp.maximum(
            jnp.dot(x.astype(bf16), w1_ref[l], preferred_element_type=f32) + b1, 0.0)
        h2 = jnp.dot(h1.astype(bf16), w2_ref[l], preferred_element_type=f32) + b2
        x = _layernorm(x + h2, ln2w, ln2b)

    # ---- readout output[:, -1, :] + classifier (lane-dense 128-wide output) ----
    x_last = jnp.dot(sel, x, preferred_element_type=f32)                        # (S, E)
    head = clswb_ref[...]
    cls_w = head[0:E, :].astype(bf16)                                           # (E, 128)
    cls_b = head[E:E + 1, :]                                                    # (1, 128)
    logits = jnp.dot(x_last.astype(bf16), cls_w, preferred_element_type=f32) + cls_b
    o_ref[...] = logits.astype(o_ref.dtype)


# ------------------------------ build-time prep ------------------------------

def positional_encoding_np(S, E):
    position = np.arange(S, dtype=np.float32)[:, None]
    div_term = np.exp(np.arange(0, E, 2, dtype=np.float32) * (-math.log(10000.0) / E))
    pe = np.zeros((S, E), np.float32)
    pe[:, 0::2] = np.sin(position * div_term)
    pe[:, 1::2] = np.cos(position * div_term)
    return pe


def init_params(key, E, nhid, nlayers, num_classes):
    """Weights stored already transposed so the kernel computes x @ W (PyTorch layout otherwise)."""
    s = 0.05
    key, *ks = jax.random.split(key, 11)
    return dict(
        wqkv=s * jax.random.normal(ks[0], (nlayers, E, 3 * E), jnp.float32),
        bqkv=s * jax.random.normal(ks[1], (nlayers, 1, 3 * E), jnp.float32),
        wo=s * jax.random.normal(ks[2], (nlayers, E, E), jnp.float32),
        bo=s * jax.random.normal(ks[3], (nlayers, 1, E), jnp.float32),
        ln1w=jnp.ones((nlayers, 1, E), jnp.float32),
        ln1b=jnp.zeros((nlayers, 1, E), jnp.float32),
        w1=s * jax.random.normal(ks[4], (nlayers, E, nhid), jnp.float32),
        b1=s * jax.random.normal(ks[5], (nlayers, 1, nhid), jnp.float32),
        w2=s * jax.random.normal(ks[6], (nlayers, nhid, E), jnp.float32),
        b2=s * jax.random.normal(ks[7], (nlayers, 1, E), jnp.float32),
        ln2w=jnp.ones((nlayers, 1, E), jnp.float32),
        ln2b=jnp.zeros((nlayers, 1, E), jnp.float32),
        cls_w=s * jax.random.normal(ks[8], (E, num_classes), jnp.float32),
        cls_b=s * jax.random.normal(ks[9], (1, num_classes), jnp.float32),
    )


def build_forward(params, nhead, S, N):
    """One-time prep of all constants / packed weights; returns a jitted src -> logits fn."""
    wqkv = np.asarray(params["wqkv"], np.float32).copy()
    L, E, threeE = wqkv.shape
    nhid = params["w1"].shape[2]
    C = params["cls_w"].shape[1]
    Dh = E // nhead
    R = S * N
    HR = nhead * R
    assert threeE == 3 * E and E % nhead == 0
    assert 3 * E <= 128 and nhid <= 128 and C <= 128 and E % 2 == 0

    # Fold the 1/sqrt(Dh) q-scale into the in-proj weights (one-time, free).
    scale = 1.0 / math.sqrt(Dh)
    bqkv = np.asarray(params["bqkv"], np.float32).copy()
    wqkv[:, :, :E] *= scale
    bqkv[:, :, :E] *= scale

    # Per-layer small vectors packed into ONE (L, 8, 128) block (all at lane offset 0).
    small = np.zeros((L, 8, 128), np.float32)
    small[:, 0, :3 * E] = bqkv[:, 0, :]
    small[:, 1, :E] = np.asarray(params["bo"])[:, 0, :]
    small[:, 2, :E] = np.asarray(params["ln1w"])[:, 0, :]
    small[:, 3, :E] = np.asarray(params["ln1b"])[:, 0, :]
    small[:, 4, :nhid] = np.asarray(params["b1"])[:, 0, :]
    small[:, 5, :E] = np.asarray(params["b2"])[:, 0, :]
    small[:, 6, :E] = np.asarray(params["ln2w"])[:, 0, :]
    small[:, 7, :E] = np.asarray(params["ln2b"])[:, 0, :]

    # Attention constants: [head lane-mask | block-diagonal bias | row replication].
    head_of_row = np.repeat(np.arange(nhead), R)          # (HR,)
    batch_of_row = np.tile(np.arange(R) % N, nhead)       # (HR,)
    same = ((head_of_row[:, None] == head_of_row[None, :]) &
            (batch_of_row[:, None] == batch_of_row[None, :]))
    bias_bd = np.where(same, 0.0, -1e9).astype(np.float32)           # (HR, HR)
    lane_head = np.arange(E) // Dh
    kv_mask = (lane_head[None, :] == head_of_row[:, None]).astype(np.float32)  # (HR, E)
    head_mask = np.concatenate([np.ones((HR, E), np.float32), kv_mask, kv_mask], axis=1)
    rep = np.zeros((HR, R), np.float32)
    rep[np.arange(HR), np.arange(HR) % R] = 1.0
    attn_consts = np.concatenate([head_mask, bias_bd, rep], axis=1)  # (HR, 3E+HR+R)

    # Tail constants: [positional encoding | head-collapse (rep^T) | last-batch selector].
    pe_flat = np.repeat(positional_encoding_np(S, E), N, axis=0)     # (R, E), row r -> pe[r // N]
    sel = np.zeros((R, R), np.float32)
    sel[np.arange(S), np.arange(S) * N + (N - 1)] = 1.0              # rows (s, n=N-1)
    tail_consts = np.concatenate([pe_flat, rep.T, sel], axis=1)      # (R, E+HR+R)

    # Classifier head padded to 128 lanes (lane-dense output); row E carries the bias.
    cls_wb = np.zeros((E + 8, 128), np.float32)
    cls_wb[:E, :C] = np.asarray(params["cls_w"])
    cls_wb[E, :C] = np.asarray(params["cls_b"])[0]

    to_bf = lambda a: jnp.asarray(np.asarray(a), jnp.bfloat16)
    arg_arrays = (
        jnp.asarray(tail_consts), jnp.asarray(attn_consts),
        to_bf(wqkv), to_bf(params["wo"]), to_bf(params["w1"]), to_bf(params["w2"]),
        jnp.asarray(small), jnp.asarray(cls_wb),
    )

    kernel = functools.partial(fused_transformer_kernel, nlayers=L)

    def full_spec(shape):
        return pl.BlockSpec(shape, lambda: (0,) * len(shape))

    in_shapes = ((R, E),) + tuple(a.shape for a in arg_arrays)
    pallas_fn = pl.pallas_call(
        kernel,
        out_shape=jax.ShapeDtypeStruct((S, 128), jnp.float32),
        in_specs=[full_spec(s) for s in in_shapes],
        out_specs=full_spec((S, 128)),
    )

    def fwd(src):
        src_flat = src.reshape(R, E).astype(jnp.float32)   # free reshape; rows in (s, n) order
        out = pallas_fn(src_flat, *arg_arrays)
        return out[:, :C]

    return jax.jit(fwd)


# ------------------------- pure-JAX reference (f32) --------------------------

def reference_forward(src, params, nhead):
    S, N, E = src.shape
    L = params["wqkv"].shape[0]
    Dh = E // nhead

    def ln(x, w, b, eps=1e-5):
        mu = jnp.mean(x, axis=-1, keepdims=True)
        var = jnp.mean((x - mu) ** 2, axis=-1, keepdims=True)
        return (x - mu) * jax.lax.rsqrt(var + eps) * w + b

    pe = jnp.asarray(positional_encoding_np(S, E))
    x = src + pe[:, None, :]
    for l in range(L):
        qkv = jnp.einsum('sne,ef->snf', x, params["wqkv"][l]) + params["bqkv"][l][0]
        q = qkv[..., :E].reshape(S, N, nhead, Dh) / math.sqrt(Dh)
        k = qkv[..., E:2 * E].reshape(S, N, nhead, Dh)
        v = qkv[..., 2 * E:].reshape(S, N, nhead, Dh)
        sc = jnp.einsum('snhd,tnhd->nhst', q, k)
        p = jax.nn.softmax(sc, axis=-1)
        ctx = jnp.einsum('nhst,tnhd->snhd', p, v).reshape(S, N, E)
        attn = jnp.einsum('sne,ef->snf', ctx, params["wo"][l]) + params["bo"][l][0]
        x = ln(x + attn, params["ln1w"][l][0], params["ln1b"][l][0])
        h = jax.nn.relu(jnp.einsum('sne,ef->snf', x, params["w1"][l]) + params["b1"][l][0])
        h = jnp.einsum('snf,fe->sne', h, params["w2"][l]) + params["b2"][l][0]
        x = ln(x + h, params["ln2w"][l][0], params["ln2b"][l][0])
    return x[:, -1, :] @ params["cls_w"] + params["cls_b"][0]


# --------------------------------- main --------------------------------------

if __name__ == "__main__":
    S, N = 8, 2                 # seq len, batch
    input_dim = 32              # d_model (E)
    nhead = 4
    nhid = 64
    nlayers = 2
    num_classes = 8

    key = jax.random.PRNGKey(0)
    key, kx, kp = jax.random.split(key, 3)
    src = jax.random.normal(kx, (S, N, input_dim), jnp.float32)
    params = init_params(kp, input_dim, nhid, nlayers, num_classes)

    fwd = build_forward(params, nhead=nhead, S=S, N=N)   # one-time constant/weight prep
    out = fwd(src)
    jax.block_until_ready(out)

    assert out.shape == (S, num_classes)
    assert bool(jnp.all(jnp.isfinite(out)))

    ref = reference_forward(src, params, nhead)
    err = float(jnp.max(jnp.abs(out - ref)))
    assert err < 5e-2, f"max |kernel - reference| = {err}"
    print("KERNEL_OK")
</pallas_src>

<mosaic_0001>
module attributes {stable_mosaic.version = 11 : i64} {
  func.func @fused_transformer_kernel(%arg0: memref<16x32xf32, #tpu.memory_space<vmem>>, %arg1: memref<16x112xf32, #tpu.memory_space<vmem>>, %arg2: memref<64x176xf32, #tpu.memory_space<vmem>>, %arg3: memref<2x32x96xbf16, #tpu.memory_space<vmem>>, %arg4: memref<2x32x32xbf16, #tpu.memory_space<vmem>>, %arg5: memref<2x32x64xbf16, #tpu.memory_space<vmem>>, %arg6: memref<2x64x32xbf16, #tpu.memory_space<vmem>>, %arg7: memref<2x8x128xf32, #tpu.memory_space<vmem>>, %arg8: memref<40x128xf32, #tpu.memory_space<vmem>>, %arg9: memref<8x128xf32, #tpu.memory_space<vmem>>) attributes {dimension_semantics = [], scalar_prefetch = 0 : i64, scratch_operands = 0 : i64, tpu.core_type = #tpu.core_type<tc>} {
    %c0 = arith.constant 0 : index
    %c0_0 = arith.constant 0 : index
    %0 = vector.load %arg1[%c0, %c0_0] : memref<16x112xf32, #tpu.memory_space<vmem>>, vector<16x112xf32>
    %c0_1 = arith.constant 0 : index
    %c0_2 = arith.constant 0 : index
    %1 = vector.load %arg2[%c0_1, %c0_2] : memref<64x176xf32, #tpu.memory_space<vmem>>, vector<64x176xf32>
    %2 = vector.extract_strided_slice %0 {offsets = [0, 0], sizes = [16, 32], strides = [1, 1]} : vector<16x112xf32> to vector<16x32xf32>
    %3 = vector.extract_strided_slice %0 {offsets = [0, 32], sizes = [16, 64], strides = [1, 1]} : vector<16x112xf32> to vector<16x64xf32>
    %4 = arith.truncf %3 : vector<16x64xf32> to vector<16x64xbf16>
    %5 = vector.extract_strided_slice %0 {offsets = [0, 96], sizes = [8, 16], strides = [1, 1]} : vector<16x112xf32> to vector<8x16xf32>
    %6 = vector.extract_strided_slice %1 {offsets = [0, 0], sizes = [64, 96], strides = [1, 1]} : vector<64x176xf32> to vector<64x96xf32>
    %7 = vector.extract_strided_slice %1 {offsets = [0, 96], sizes = [64, 64], strides = [1, 1]} : vector<64x176xf32> to vector<64x64xf32>
    %8 = vector.extract_strided_slice %1 {offsets = [0, 160], sizes = [64, 16], strides = [1, 1]} : vector<64x176xf32> to vector<64x16xf32>
    %9 = arith.truncf %8 : vector<64x16xf32> to vector<64x16xbf16>
    %c0_3 = arith.constant 0 : index
    %c0_4 = arith.constant 0 : index
    %10 = vector.load %arg0[%c0_3, %c0_4] : memref<16x32xf32, #tpu.memory_space<vmem>>, vector<16x32xf32>
    %11 = arith.addf %10, %2 : vector<16x32xf32>
    %c0_5 = arith.constant 0 : index
    %c0_6 = arith.constant 0 : index
    %c0_7 = arith.constant 0 : index
    %12 = vector.load %arg7[%c0_5, %c0_6, %c0_7] : memref<2x8x128xf32, #tpu.memory_space<vmem>>, vector<1x8x128xf32>
    %13 = vector.shape_cast %12 : vector<1x8x128xf32> to vector<8x128xf32>
    %14 = vector.extract_strided_slice %13 {offsets = [0, 0], sizes = [1, 96], strides = [1, 1]} : vector<8x128xf32> to vector<1x96xf32>
    %15 = vector.extract_strided_slice %13 {offsets = [1, 0], sizes = [1, 32], strides = [1, 1]} : vector<8x128xf32> to vector<1x32xf32>
    %16 = vector.extract_strided_slice %13 {offsets = [2, 0], sizes = [1, 32], strides = [1, 1]} : vector<8x128xf32> to vector<1x32xf32>
    %17 = vector.extract_strided_slice %13 {offsets = [3, 0], sizes = [1, 32], strides = [1, 1]} : vector<8x128xf32> to vector<1x32xf32>
    %18 = vector.extract_strided_slice %13 {offsets = [4, 0], sizes = [1, 64], strides = [1, 1]} : vector<8x128xf32> to vector<1x64xf32>
    %19 = vector.extract_strided_slice %13 {offsets = [5, 0], sizes = [1, 32], strides = [1, 1]} : vector<8x128xf32> to vector<1x32xf32>
    %20 = vector.extract_strided_slice %13 {offsets = [6, 0], sizes = [1, 32], strides = [1, 1]} : vector<8x128xf32> to vector<1x32xf32>
    %21 = vector.extract_strided_slice %13 {offsets = [7, 0], sizes = [1, 32], strides = [1, 1]} : vector<8x128xf32> to vector<1x32xf32>
    %22 = arith.truncf %11 : vector<16x32xf32> to vector<16x32xbf16>
    %cst = arith.constant dense<0.000000e+00> : vector<64x32xf32>
    %23 = tpu.matmul %9, %22, %cst {dimension_numbers = #tpu.dot_dimension_numbers<[1], [0], [0], [1], [0, 0, 1, 1], [], []>} : vector<64x16xbf16>, vector<16x32xbf16>, vector<64x32xf32> -> vector<64x32xf32>
    %24 = arith.truncf %23 : vector<64x32xf32> to vector<64x32xbf16>
    %c0_8 = arith.constant 0 : index
    %c0_9 = arith.constant 0 : index
    %c0_10 = arith.constant 0 : index
    %25 = vector.load %arg3[%c0_8, %c0_9, %c0_10] : memref<2x32x96xbf16, #tpu.memory_space<vmem>>, vector<1x32x96xbf16>
    %26 = vector.shape_cast %25 : vector<1x32x96xbf16> to vector<32x96xbf16>
    %cst_11 = arith.constant dense<0.000000e+00> : vector<64x96xf32>
    %27 = tpu.matmul %24, %26, %cst_11 {dimension_numbers = #tpu.dot_dimension_numbers<[1], [0], [0], [1], [0, 0, 1, 1], [], []>} : vector<64x32xbf16>, vector<32x96xbf16>, vector<64x96xf32> -> vector<64x96xf32>
    %28 = vector.broadcast %14 : vector<1x96xf32> to vector<64x96xf32>
    %29 = arith.addf %27, %28 : vector<64x96xf32>
    %30 = arith.mulf %29, %6 : vector<64x96xf32>
    %31 = vector.extract_strided_slice %30 {offsets = [0, 0], sizes = [64, 32], strides = [1, 1]} : vector<64x96xf32> to vector<64x32xf32>
    %32 = vector.extract_strided_slice %30 {offsets = [0, 32], sizes = [64, 32], strides = [1, 1]} : vector<64x96xf32> to vector<64x32xf32>
    %33 = vector.extract_strided_slice %30 {offsets = [0, 64], sizes = [64, 32], strides = [1, 1]} : vector<64x96xf32> to vector<64x32xf32>
    %34 = arith.truncf %31 : vector<64x32xf32> to vector<64x32xbf16>
    %35 = arith.truncf %32 : vector<64x32xf32> to vector<64x32xbf16>
    %cst_12 = arith.constant dense<0.000000e+00> : vector<64x64xf32>
    %36 = tpu.matmul %34, %35, %cst_12 {dimension_numbers = #tpu.dot_dimension_numbers<[1], [1], [0], [0], [0, 0, 1, 0], [], []>} : vector<64x32xbf16>, vector<64x32xbf16>, vector<64x64xf32> -> vector<64x64xf32>
    %37 = arith.addf %36, %7 : vector<64x64xf32>
    %cst_13 = arith.constant dense<0xFF800000> : vector<64xf32>
    %38 = vector.multi_reduction <maximumf>, %37, %cst_13 [1] : vector<64x64xf32> to vector<64xf32>
    %39 = vector.shape_cast %38 : vector<64xf32> to vector<64x1xf32>
    %40 = vector.broadcast %39 : vector<64x1xf32> to vector<64x64xf32>
    %41 = arith.subf %37, %40 : vector<64x64xf32>
    %42 = math.exp %41 : vector<64x64xf32>
    %cst_14 = arith.constant dense<0.000000e+00> : vector<64xf32>
    %43 = vector.multi_reduction <add>, %42, %cst_14 [1] : vector<64x64xf32> to vector<64xf32>
    %44 = vector.shape_cast %43 : vector<64xf32> to vector<64x1xf32>
    %45 = tpu.reciprocal %44 {approx = true} : vector<64x1xf32> -> vector<64x1xf32>
    %46 = vector.broadcast %45 : vector<64x1xf32> to vector<64x64xf32>
    %47 = arith.mulf %42, %46 : vector<64x64xf32>
    %48 = arith.truncf %47 : vector<64x64xf32> to vector<64x64xbf16>
    %49 = arith.truncf %33 : vector<64x32xf32> to vector<64x32xbf16>
    %cst_15 = arith.constant dense<0.000000e+00> : vector<64x32xf32>
    %50 = tpu.matmul %48, %49, %cst_15 {dimension_numbers = #tpu.dot_dimension_numbers<[1], [0], [0], [1], [0, 0, 1, 1], [], []>} : vector<64x64xbf16>, vector<64x32xbf16>, vector<64x32xf32> -> vector<64x32xf32>
    %51 = arith.truncf %50 : vector<64x32xf32> to vector<64x32xbf16>
    %cst_16 = arith.constant dense<0.000000e+00> : vector<16x32xf32>
    %52 = tpu.matmul %4, %51, %cst_16 {dimension_numbers = #tpu.dot_dimension_numbers<[1], [0], [0], [1], [0, 0, 1, 1], [], []>} : vector<16x64xbf16>, vector<64x32xbf16>, vector<16x32xf32> -> vector<16x32xf32>
    %53 = arith.truncf %52 : vector<16x32xf32> to vector<16x32xbf16>
    %c0_17 = arith.constant 0 : index
    %c0_18 = arith.constant 0 : index
    %c0_19 = arith.constant 0 : index
    %54 = vector.load %arg4[%c0_17, %c0_18, %c0_19] : memref<2x32x32xbf16, #tpu.memory_space<vmem>>, vector<1x32x32xbf16>
    %55 = vector.shape_cast %54 : vector<1x32x32xbf16> to vector<32x32xbf16>
    %cst_20 = arith.constant dense<0.000000e+00> : vector<16x32xf32>
    %56 = tpu.matmul %53, %55, %cst_20 {dimension_numbers = #tpu.dot_dimension_numbers<[1], [0], [0], [1], [0, 0, 1, 1], [], []>} : vector<16x32xbf16>, vector<32x32xbf16>, vector<16x32xf32> -> vector<16x32xf32>
    %57 = vector.broadcast %15 : vector<1x32xf32> to vector<16x32xf32>
    %58 = arith.addf %56, %57 : vector<16x32xf32>
    %59 = arith.addf %11, %58 : vector<16x32xf32>
    %cst_21 = arith.constant dense<0.000000e+00> : vector<16xf32>
    %60 = vector.multi_reduction <add>, %59, %cst_21 [1] : vector<16x32xf32> to vector<16xf32>
    %61 = vector.shape_cast %60 : vector<16xf32> to vector<16x1xf32>
    %cst_22 = arith.constant 3.200000e+01 : f32
    %62 = vector.broadcast %cst_22 : f32 to vector<16x1xf32>
    %63 = arith.divf %61, %62 : vector<16x1xf32>
    %64 = vector.broadcast %63 : vector<16x1xf32> to vector<16x32xf32>
    %65 = arith.subf %59, %64 : vector<16x32xf32>
    %66 = arith.mulf %65, %65 : vector<16x32xf32>
    %cst_23 = arith.constant dense<0.000000e+00> : vector<16xf32>
    %67 = vector.multi_reduction <add>, %66, %cst_23 [1] : vector<16x32xf32> to vector<16xf32>
    %68 = vector.shape_cast %67 : vector<16xf32> to vector<16x1xf32>
    %cst_24 = arith.constant 3.200000e+01 : f32
    %69 = vector.broadcast %cst_24 : f32 to vector<16x1xf32>
    %70 = arith.divf %68, %69 : vector<16x1xf32>
    %71 = vector.broadcast %63 : vector<16x1xf32> to vector<16x32xf32>
    %72 = arith.subf %59, %71 : vector<16x32xf32>
    %cst_25 = arith.constant 9.99999974E-6 : f32
    %73 = vector.broadcast %cst_25 : f32 to vector<16x1xf32>
    %74 = arith.addf %70, %73 : vector<16x1xf32>
    %75 = math.rsqrt %74 : vector<16x1xf32>
    %76 = vector.broadcast %75 : vector<16x1xf32> to vector<16x32xf32>
    %77 = arith.mulf %72, %76 : vector<16x32xf32>
    %78 = vector.broadcast %16 : vector<1x32xf32> to vector<16x32xf32>
    %79 = arith.mulf %77, %78 : vector<16x32xf32>
    %80 = vector.broadcast %17 : vector<1x32xf32> to vector<16x32xf32>
    %81 = arith.addf %79, %80 : vector<16x32xf32>
    %82 = arith.truncf %81 : vector<16x32xf32> to vector<16x32xbf16>
    %c0_26 = arith.constant 0 : index
    %c0_27 = arith.constant 0 : index
    %c0_28 = arith.constant 0 : index
    %83 = vector.load %arg5[%c0_26, %c0_27, %c0_28] : memref<2x32x64xbf16, #tpu.memory_space<vmem>>, vector<1x32x64xbf16>
    %84 = vector.shape_cast %83 : vector<1x32x64xbf16> to vector<32x64xbf16>
    %cst_29 = arith.constant dense<0.000000e+00> : vector<16x64xf32>
    %85 = tpu.matmul %82, %84, %cst_29 {dimension_numbers = #tpu.dot_dimension_numbers<[1], [0], [0], [1], [0, 0, 1, 1], [], []>} : vector<16x32xbf16>, vector<32x64xbf16>, vector<16x64xf32> -> vector<16x64xf32>
    %86 = vector.broadcast %18 : vector<1x64xf32> to vector<16x64xf32>
    %87 = arith.addf %85, %86 : vector<16x64xf32>
    %cst_30 = arith.constant 0.000000e+00 : f32
    %88 = vector.broadcast %cst_30 : f32 to vector<16x64xf32>
    %89 = arith.maximumf %87, %88 : vector<16x64xf32>
    %90 = arith.truncf %89 : vector<16x64xf32> to vector<16x64xbf16>
    %c0_31 = arith.constant 0 : index
    %c0_32 = arith.constant 0 : index
    %c0_33 = arith.constant 0 : index
    %91 = vector.load %arg6[%c0_31, %c0_32, %c0_33] : memref<2x64x32xbf16, #tpu.memory_space<vmem>>, vector<1x64x32xbf16>
    %92 = vector.shape_cast %91 : vector<1x64x32xbf16> to vector<64x32xbf16>
    %cst_34 = arith.constant dense<0.000000e+00> : vector<16x32xf32>
    %93 = tpu.matmul %90, %92, %cst_34 {dimension_numbers = #tpu.dot_dimension_numbers<[1], [0], [0], [1], [0, 0, 1, 1], [], []>} : vector<16x64xbf16>, vector<64x32xbf16>, vector<16x32xf32> -> vector<16x32xf32>
    %94 = vector.broadcast %19 : vector<1x32xf32> to vector<16x32xf32>
    %95 = arith.addf %93, %94 : vector<16x32xf32>
    %96 = arith.addf %81, %95 : vector<16x32xf32>
    %cst_35 = arith.constant dense<0.000000e+00> : vector<16xf32>
    %97 = vector.multi_reduction <add>, %96, %cst_35 [1] : vector<16x32xf32> to vector<16xf32>
    %98 = vector.shape_cast %97 : vector<16xf32> to vector<16x1xf32>
    %cst_36 = arith.constant 3.200000e+01 : f32
    %99 = vector.broadcast %cst_36 : f32 to vector<16x1xf32>
    %100 = arith.divf %98, %99 : vector<16x1xf32>
    %101 = vector.broadcast %100 : vector<16x1xf32> to vector<16x32xf32>
    %102 = arith.subf %96, %101 : vector<16x32xf32>
    %103 = arith.mulf %102, %102 : vector<16x32xf32>
    %cst_37 = arith.constant dense<0.000000e+00> : vector<16xf32>
    %104 = vector.multi_reduction <add>, %103, %cst_37 [1] : vector<16x32xf32> to vector<16xf32>
    %105 = vector.shape_cast %104 : vector<16xf32> to vector<16x1xf32>
    %cst_38 = arith.constant 3.200000e+01 : f32
    %106 = vector.broadcast %cst_38 : f32 to vector<16x1xf32>
    %107 = arith.divf %105, %106 : vector<16x1xf32>
    %108 = vector.broadcast %100 : vector<16x1xf32> to vector<16x32xf32>
    %109 = arith.subf %96, %108 : vector<16x32xf32>
    %cst_39 = arith.constant 9.99999974E-6 : f32
    %110 = vector.broadcast %cst_39 : f32 to vector<16x1xf32>
    %111 = arith.addf %107, %110 : vector<16x1xf32>
    %112 = math.rsqrt %111 : vector<16x1xf32>
    %113 = vector.broadcast %112 : vector<16x1xf32> to vector<16x32xf32>
    %114 = arith.mulf %109, %113 : vector<16x32xf32>
    %115 = vector.broadcast %20 : vector<1x32xf32> to vector<16x32xf32>
    %116 = arith.mulf %114, %115 : vector<16x32xf32>
    %117 = vector.broadcast %21 : vector<1x32xf32> to vector<16x32xf32>
    %118 = arith.addf %116, %117 : vector<16x32xf32>
    %c1 = arith.constant 1 : index
    %c0_40 = arith.constant 0 : index
    %c0_41 = arith.constant 0 : index
    %119 = vector.load %arg7[%c1, %c0_40, %c0_41] : memref<2x8x128xf32, #tpu.memory_space<vmem>>, vector<1x8x128xf32>
    %120 = vector.shape_cast %119 : vector<1x8x128xf32> to vector<8x128xf32>
    %121 = vector.extract_strided_slice %120 {offsets = [0, 0], sizes = [1, 96], strides = [1, 1]} : vector<8x128xf32> to vector<1x96xf32>
    %122 = vector.extract_strided_slice %120 {offsets = [1, 0], sizes = [1, 32], strides = [1, 1]} : vector<8x128xf32> to vector<1x32xf32>
    %123 = vector.extract_strided_slice %120 {offsets = [2, 0], sizes = [1, 32], strides = [1, 1]} : vector<8x128xf32> to vector<1x32xf32>
    %124 = vector.extract_strided_slice %120 {offsets = [3, 0], sizes = [1, 32], strides = [1, 1]} : vector<8x128xf32> to vector<1x32xf32>
    %125 = vector.extract_strided_slice %120 {offsets = [4, 0], sizes = [1, 64], strides = [1, 1]} : vector<8x128xf32> to vector<1x64xf32>
    %126 = vector.extract_strided_slice %120 {offsets = [5, 0], sizes = [1, 32], strides = [1, 1]} : vector<8x128xf32> to vector<1x32xf32>
    %127 = vector.extract_strided_slice %120 {offsets = [6, 0], sizes = [1, 32], strides = [1, 1]} : vector<8x128xf32> to vector<1x32xf32>
    %128 = vector.extract_strided_slice %120 {offsets = [7, 0], sizes = [1, 32], strides = [1, 1]} : vector<8x128xf32> to vector<1x32xf32>
    %129 = arith.truncf %118 : vector<16x32xf32> to vector<16x32xbf16>
    %cst_42 = arith.constant dense<0.000000e+00> : vector<64x32xf32>
    %130 = tpu.matmul %9, %129, %cst_42 {dimension_numbers = #tpu.dot_dimension_numbers<[1], [0], [0], [1], [0, 0, 1, 1], [], []>} : vector<64x16xbf16>, vector<16x32xbf16>, vector<64x32xf32> -> vector<64x32xf32>
    %131 = arith.truncf %130 : vector<64x32xf32> to vector<64x32xbf16>
    %c1_43 = arith.constant 1 : index
    %c0_44 = arith.constant 0 : index
    %c0_45 = arith.constant 0 : index
    %132 = vector.load %arg3[%c1_43, %c0_44, %c0_45] : memref<2x32x96xbf16, #tpu.memory_space<vmem>>, vector<1x32x96xbf16>
    %133 = vector.shape_cast %132 : vector<1x32x96xbf16> to vector<32x96xbf16>
    %cst_46 = arith.constant dense<0.000000e+00> : vector<64x96xf32>
    %134 = tpu.matmul %131, %133, %cst_46 {dimension_numbers = #tpu.dot_dimension_numbers<[1], [0], [0], [1], [0, 0, 1, 1], [], []>} : vector<64x32xbf16>, vector<32x96xbf16>, vector<64x96xf32> -> vector<64x96xf32>
    %135 = vector.broadcast %121 : vector<1x96xf32> to vector<64x96xf32>
    %136 = arith.addf %134, %135 : vector<64x96xf32>
    %137 = arith.mulf %136, %6 : vector<64x96xf32>
    %138 = vector.extract_strided_slice %137 {offsets = [0, 0], sizes = [64, 32], strides = [1, 1]} : vector<64x96xf32> to vector<64x32xf32>
    %139 = vector.extract_strided_slice %137 {offsets = [0, 32], sizes = [64, 32], strides = [1, 1]} : vector<64x96xf32> to vector<64x32xf32>
    %140 = vector.extract_strided_slice %137 {offsets = [0, 64], sizes = [64, 32], strides = [1, 1]} : vector<64x96xf32> to vector<64x32xf32>
    %141 = arith.truncf %138 : vector<64x32xf32> to vector<64x32xbf16>
    %142 = arith.truncf %139 : vector<64x32xf32> to vector<64x32xbf16>
    %cst_47 = arith.constant dense<0.000000e+00> : vector<64x64xf32>
    %143 = tpu.matmul %141, %142, %cst_47 {dimension_numbers = #tpu.dot_dimension_numbers<[1], [1], [0], [0], [0, 0, 1, 0], [], []>} : vector<64x32xbf16>, vector<64x32xbf16>, vector<64x64xf32> -> vector<64x64xf32>
    %144 = arith.addf %143, %7 : vector<64x64xf32>
    %cst_48 = arith.constant dense<0xFF800000> : vector<64xf32>
    %145 = vector.multi_reduction <maximumf>, %144, %cst_48 [1] : vector<64x64xf32> to vector<64xf32>
    %146 = vector.shape_cast %145 : vector<64xf32> to vector<64x1xf32>
    %147 = vector.broadcast %146 : vector<64x1xf32> to vector<64x64xf32>
    %148 = arith.subf %144, %147 : vector<64x64xf32>
    %149 = math.exp %148 : vector<64x64xf32>
    %cst_49 = arith.constant dense<0.000000e+00> : vector<64xf32>
    %150 = vector.multi_reduction <add>, %149, %cst_49 [1] : vector<64x64xf32> to vector<64xf32>
    %151 = vector.shape_cast %150 : vector<64xf32> to vector<64x1xf32>
    %152 = tpu.reciprocal %151 {approx = true} : vector<64x1xf32> -> vector<64x1xf32>
    %153 = vector.broadcast %152 : vector<64x1xf32> to vector<64x64xf32>
    %154 = arith.mulf %149, %153 : vector<64x64xf32>
    %155 = arith.truncf %154 : vector<64x64xf32> to vector<64x64xbf16>
    %156 = arith.truncf %140 : vector<64x32xf32> to vector<64x32xbf16>
    %cst_50 = arith.constant dense<0.000000e+00> : vector<64x32xf32>
    %157 = tpu.matmul %155, %156, %cst_50 {dimension_numbers = #tpu.dot_dimension_numbers<[1], [0], [0], [1], [0, 0, 1, 1], [], []>} : vector<64x64xbf16>, vector<64x32xbf16>, vector<64x32xf32> -> vector<64x32xf32>
    %158 = arith.truncf %157 : vector<64x32xf32> to vector<64x32xbf16>
    %cst_51 = arith.constant dense<0.000000e+00> : vector<16x32xf32>
    %159 = tpu.matmul %4, %158, %cst_51 {dimension_numbers = #tpu.dot_dimension_numbers<[1], [0], [0], [1], [0, 0, 1, 1], [], []>} : vector<16x64xbf16>, vector<64x32xbf16>, vector<16x32xf32> -> vector<16x32xf32>
    %160 = arith.truncf %159 : vector<16x32xf32> to vector<16x32xbf16>
    %c1_52 = arith.constant 1 : index
    %c0_53 = arith.constant 0 : index
    %c0_54 = arith.constant 0 : index
    %161 = vector.load %arg4[%c1_52, %c0_53, %c0_54] : memref<2x32x32xbf16, #tpu.memory_space<vmem>>, vector<1x32x32xbf16>
    %162 = vector.shape_cast %161 : vector<1x32x32xbf16> to vector<32x32xbf16>
    %cst_55 = arith.constant dense<0.000000e+00> : vector<16x32xf32>
    %163 = tpu.matmul %160, %162, %cst_55 {dimension_numbers = #tpu.dot_dimension_numbers<[1], [0], [0], [1], [0, 0, 1, 1], [], []>} : vector<16x32xbf16>, vector<32x32xbf16>, vector<16x32xf32> -> vector<16x32xf32>
    %164 = vector.broadcast %122 : vector<1x32xf32> to vector<16x32xf32>
    %165 = arith.addf %163, %164 : vector<16x32xf32>
    %166 = arith.addf %118, %165 : vector<16x32xf32>
    %cst_56 = arith.constant dense<0.000000e+00> : vector<16xf32>
    %167 = vector.multi_reduction <add>, %166, %cst_56 [1] : vector<16x32xf32> to vector<16xf32>
    %168 = vector.shape_cast %167 : vector<16xf32> to vector<16x1xf32>
    %cst_57 = arith.constant 3.200000e+01 : f32
    %169 = vector.broadcast %cst_57 : f32 to vector<16x1xf32>
    %170 = arith.divf %168, %169 : vector<16x1xf32>
    %171 = vector.broadcast %170 : vector<16x1xf32> to vector<16x32xf32>
    %172 = arith.subf %166, %171 : vector<16x32xf32>
    %173 = arith.mulf %172, %172 : vector<16x32xf32>
    %cst_58 = arith.constant dense<0.000000e+00> : vector<16xf32>
    %174 = vector.multi_reduction <add>, %173, %cst_58 [1] : vector<16x32xf32> to vector<16xf32>
    %175 = vector.shape_cast %174 : vector<16xf32> to vector<16x1xf32>
    %cst_59 = arith.constant 3.200000e+01 : f32
    %176 = vector.broadcast %cst_59 : f32 to vector<16x1xf32>
    %177 = arith.divf %175, %176 : vector<16x1xf32>
    %178 = vector.broadcast %170 : vector<16x1xf32> to vector<16x32xf32>
    %179 = arith.subf %166, %178 : vector<16x32xf32>
    %cst_60 = arith.constant 9.99999974E-6 : f32
    %180 = vector.broadcast %cst_60 : f32 to vector<16x1xf32>
    %181 = arith.addf %177, %180 : vector<16x1xf32>
    %182 = math.rsqrt %181 : vector<16x1xf32>
    %183 = vector.broadcast %182 : vector<16x1xf32> to vector<16x32xf32>
    %184 = arith.mulf %179, %183 : vector<16x32xf32>
    %185 = vector.broadcast %123 : vector<1x32xf32> to vector<16x32xf32>
    %186 = arith.mulf %184, %185 : vector<16x32xf32>
    %187 = vector.broadcast %124 : vector<1x32xf32> to vector<16x32xf32>
    %188 = arith.addf %186, %187 : vector<16x32xf32>
    %189 = arith.truncf %188 : vector<16x32xf32> to vector<16x32xbf16>
    %c1_61 = arith.constant 1 : index
    %c0_62 = arith.constant 0 : index
    %c0_63 = arith.constant 0 : index
    %190 = vector.load %arg5[%c1_61, %c0_62, %c0_63] : memref<2x32x64xbf16, #tpu.memory_space<vmem>>, vector<1x32x64xbf16>
    %191 = vector.shape_cast %190 : vector<1x32x64xbf16> to vector<32x64xbf16>
    %cst_64 = arith.constant dense<0.000000e+00> : vector<16x64xf32>
    %192 = tpu.matmul %189, %191, %cst_64 {dimension_numbers = #tpu.dot_dimension_numbers<[1], [0], [0], [1], [0, 0, 1, 1], [], []>} : vector<16x32xbf16>, vector<32x64xbf16>, vector<16x64xf32> -> vector<16x64xf32>
    %193 = vector.broadcast %125 : vector<1x64xf32> to vector<16x64xf32>
    %194 = arith.addf %192, %193 : vector<16x64xf32>
    %cst_65 = arith.constant 0.000000e+00 : f32
    %195 = vector.broadcast %cst_65 : f32 to vector<16x64xf32>
    %196 = arith.maximumf %194, %195 : vector<16x64xf32>
    %197 = arith.truncf %196 : vector<16x64xf32> to vector<16x64xbf16>
    %c1_66 = arith.constant 1 : index
    %c0_67 = arith.constant 0 : index
    %c0_68 = arith.constant 0 : index
    %198 = vector.load %arg6[%c1_66, %c0_67, %c0_68] : memref<2x64x32xbf16, #tpu.memory_space<vmem>>, vector<1x64x32xbf16>
    %199 = vector.shape_cast %198 : vector<1x64x32xbf16> to vector<64x32xbf16>
    %cst_69 = arith.constant dense<0.000000e+00> : vector<16x32xf32>
    %200 = tpu.matmul %197, %199, %cst_69 {dimension_numbers = #tpu.dot_dimension_numbers<[1], [0], [0], [1], [0, 0, 1, 1], [], []>} : vector<16x64xbf16>, vector<64x32xbf16>, vector<16x32xf32> -> vector<16x32xf32>
    %201 = vector.broadcast %126 : vector<1x32xf32> to vector<16x32xf32>
    %202 = arith.addf %200, %201 : vector<16x32xf32>
    %203 = arith.addf %188, %202 : vector<16x32xf32>
    %cst_70 = arith.constant dense<0.000000e+00> : vector<16xf32>
    %204 = vector.multi_reduction <add>, %203, %cst_70 [1] : vector<16x32xf32> to vector<16xf32>
    %205 = vector.shape_cast %204 : vector<16xf32> to vector<16x1xf32>
    %cst_71 = arith.constant 3.200000e+01 : f32
    %206 = vector.broadcast %cst_71 : f32 to vector<16x1xf32>
    %207 = arith.divf %205, %206 : vector<16x1xf32>
    %208 = vector.broadcast %207 : vector<16x1xf32> to vector<16x32xf32>
    %209 = arith.subf %203, %208 : vector<16x32xf32>
    %210 = arith.mulf %209, %209 : vector<16x32xf32>
    %cst_72 = arith.constant dense<0.000000e+00> : vector<16xf32>
    %211 = vector.multi_reduction <add>, %210, %cst_72 [1] : vector<16x32xf32> to vector<16xf32>
    %212 = vector.shape_cast %211 : vector<16xf32> to vector<16x1xf32>
    %cst_73 = arith.constant 3.200000e+01 : f32
    %213 = vector.broadcast %cst_73 : f32 to vector<16x1xf32>
    %214 = arith.divf %212, %213 : vector<16x1xf32>
    %215 = vector.broadcast %207 : vector<16x1xf32> to vector<16x32xf32>
    %216 = arith.subf %203, %215 : vector<16x32xf32>
    %cst_74 = arith.constant 9.99999974E-6 : f32
    %217 = vector.broadcast %cst_74 : f32 to vector<16x1xf32>
    %218 = arith.addf %214, %217 : vector<16x1xf32>
    %219 = math.rsqrt %218 : vector<16x1xf32>
    %220 = vector.broadcast %219 : vector<16x1xf32> to vector<16x32xf32>
    %221 = arith.mulf %216, %220 : vector<16x32xf32>
    %222 = vector.broadcast %127 : vector<1x32xf32> to vector<16x32xf32>
    %223 = arith.mulf %221, %222 : vector<16x32xf32>
    %224 = vector.broadcast %128 : vector<1x32xf32> to vector<16x32xf32>
    %225 = arith.addf %223, %224 : vector<16x32xf32>
    %cst_75 = arith.constant dense<0.000000e+00> : vector<8x32xf32>
    %226 = tpu.matmul %5, %225, %cst_75 {dimension_numbers = #tpu.dot_dimension_numbers<[1], [0], [0], [1], [0, 0, 1, 1], [], []>} : vector<8x16xf32>, vector<16x32xf32>, vector<8x32xf32> -> vector<8x32xf32>
    %c0_76 = arith.constant 0 : index
    %c0_77 = arith.constant 0 : index
    %227 = vector.load %arg8[%c0_76, %c0_77] : memref<40x128xf32, #tpu.memory_space<vmem>>, vector<40x128xf32>
    %228 = vector.extract_strided_slice %227 {offsets = [0, 0], sizes = [32, 128], strides = [1, 1]} : vector<40x128xf32> to vector<32x128xf32>
    %229 = arith.truncf %228 : vector<32x128xf32> to vector<32x128xbf16>
    %230 = vector.extract_strided_slice %227 {offsets = [32, 0], sizes = [1, 128], strides = [1, 1]} : vector<40x128xf32> to vector<1x128xf32>
    %231 = arith.truncf %226 : vector<8x32xf32> to vector<8x32xbf16>
    %cst_78 = arith.constant dense<0.000000e+00> : vector<8x128xf32>
    %232 = tpu.matmul %231, %229, %cst_78 {dimension_numbers = #tpu.dot_dimension_numbers<[1], [0], [0], [1], [0, 0, 1, 1], [], []>} : vector<8x32xbf16>, vector<32x128xbf16>, vector<8x128xf32> -> vector<8x128xf32>
    %233 = vector.broadcast %230 : vector<1x128xf32> to vector<8x128xf32>
    %234 = arith.addf %232, %233 : vector<8x128xf32>
    %c0_79 = arith.constant 0 : index
    %c0_80 = arith.constant 0 : index
    %235 = vector.load %arg9[%c0_79, %c0_80] : memref<8x128xf32, #tpu.memory_space<vmem>>, vector<8x128xf32>
    tpu.vector_store %arg9[%c0_79, %c0_80], %234 {strides = array<i32>} : memref<8x128xf32, #tpu.memory_space<vmem>>, vector<8x128xf32>,
    return
  }
}

</mosaic_0001>

<llo_original>
// kernel: fwd.1
$region0: #{fwd.1}
  #allocation0 [shape = 'u32[]', space=smem, size = 0x4, offset = 0x4, fixed_abs, tag = 'smem constant byte address 0x4 - core index']
  #allocation1 [shape = 'u32[72,128]{1,0:T(1,128)}', space=vmem, size = 0x9000, scoped, tag = 'internal scratch']
  %s0 = inlined_call_operand.hbm [shape: f32[16,32], index: 0, kind: input, shape index: {}]
  %s1 = inlined_call_operand.hbm [shape: f32[16,112], index: 1, kind: input, shape index: {}]
  %s2 = inlined_call_operand.hbm [shape: f32[64,176], index: 2, kind: input, shape index: {}]
  %s3 = inlined_call_operand.hbm [shape: bf16[2,32,96], index: 3, kind: input, shape index: {}]
  %s4 = inlined_call_operand.hbm [shape: bf16[2,32,32], index: 4, kind: input, shape index: {}]
  %s5 = inlined_call_operand.hbm [shape: bf16[2,32,64], index: 5, kind: input, shape index: {}]
  %s6 = inlined_call_operand.hbm [shape: bf16[2,64,32], index: 6, kind: input, shape index: {}]
  %s7 = inlined_call_operand.hbm [shape: f32[2,8,128], index: 7, kind: input, shape index: {}]
  %s8 = inlined_call_operand.hbm [shape: f32[40,128], index: 8, kind: input, shape index: {}]
  %s9 = inlined_call_operand.hbm [shape: f32[8,128], index: 9, kind: output, shape index: {}]
  %s10 = sld [smem:[#allocation0]]
  $region82: #{fwd.1} parent=0
    _
  %s12 = ssub.s32 1, %s10
  %s13 = scalar_select 0, %s12, %s10
  $region1: #{fwd.1} parent=0
    #allocation2 [shape = 'u8[8192]{0}', space=vmem, size = 0x2000, scoped, tag = 'input window, operand 0, single buffered']
    #allocation3 [shape = 's32[1]{0}', space=sflag, size = 0x4, scoped, tag = 'scoped memory for fwd.1']
    #allocation4 [shape = 's32[1]{0}', space=sflag, size = 0x4, scoped, tag = 'scoped memory for fwd.1']
    #allocation5 [shape = 'u8[8192]{0}', space=vmem, size = 0x2000, scoped, tag = 'input window, operand 1, single buffered']
    #allocation6 [shape = 's32[1]{0}', space=sflag, size = 0x4, scoped, tag = 'scoped memory for fwd.1']
    #allocation7 [shape = 'u8[65536]{0}', space=vmem, size = 0x10000, scoped, tag = 'input window, operand 2, single buffered']
    #allocation8 [shape = 'u8[16384]{0}', space=vmem, size = 0x4000, scoped, tag = 'input window, operand 3, single buffered']
    #allocation9 [shape = 's32[1]{0}', space=sflag, size = 0x4, scoped, tag = 'scoped memory for fwd.1']
    #allocation10 [shape = 'u8[16384]{0}', space=vmem, size = 0x4000, scoped, tag = 'input window, operand 4, single buffered']
    #allocation11 [shape = 'u8[16384]{0}', space=vmem, size = 0x4000, scoped, tag = 'input window, operand 5, single buffered']
    #allocation12 [shape = 's32[1]{0}', space=sflag, size = 0x4, scoped, tag = 'scoped memory for fwd.1']
    #allocation13 [shape = 'u8[32768]{0}', space=vmem, size = 0x8000, scoped, tag = 'input window, operand 6, single buffered']
    #allocation14 [shape = 'u8[8192]{0}', space=vmem, size = 0x2000, scoped, tag = 'input window, operand 7, single buffered']
    #allocation15 [shape = 's32[1]{0}', space=sflag, size = 0x4, scoped, tag = 'scoped memory for fwd.1']
    #allocation16 [shape = 'u8[20480]{0}', space=vmem, size = 0x5000, scoped, tag = 'input window, operand 8, single buffered']
    #allocation17 [shape = 'u8[4096]{0}', space=vmem, size = 0x1000, scoped, tag = 'output window, operand 0, single buffered']
    %14 = vsyncpa [#allocation3], 0
    %15 = vsyncpa [#allocation6], 0
    %16 = vsyncpa [#allocation9], 0
    %17 = vsyncpa [#allocation12], 0
    %18 = vsyncpa [#allocation15], 0
    %19 = vsyncpa [#allocation4], 0
    // Predicated region
    $region2: #{fwd.1} parent=1 // pred_check
      _
    $region3: #{fwd.1} parent=1 // pred_check_branch
      %21 = sbr.rel (0) target = $region5
    $region4: #{fwd.1} parent=1 // pred_region
      %23 = vsyncadd [#allocation3], 0
      %s24 = sshll.u32 %s0, 4
      %s25 = int_to_ptr.hbm [resolvable:$true] %s24
      %s26 = sshll.u32 [#allocation2], 4
      %s27 = int_to_ptr.vmem [resolvable:$true] %s26
      %32 = dma.hbm_to_vmem [thread:$0]  %s25, 256, %s27, [#allocation3], 128, 128, 8
    $region5: #{fwd.1} parent=1 // pred_fallthru
      _
    // Predicated region
    $region6: #{fwd.1} parent=1 // pred_check
      _
    $region7: #{fwd.1} parent=1 // pred_check_branch
      %34 = sbr.rel (0) target = $region9
    $region8: #{fwd.1} parent=1 // pred_region
      %36 = vsyncadd [#allocation6], 0
      %s37 = sshll.u32 %s1, 4
      %s38 = int_to_ptr.hbm [resolvable:$true] %s37
      %s39 = sshll.u32 [#allocation5], 4
      %s40 = int_to_ptr.vmem [resolvable:$true] %s39
      %45 = dma.hbm_to_vmem [thread:$0]  %s38, 256, %s40, [#allocation6], 128, 128, 8
    $region9: #{fwd.1} parent=1 // pred_fallthru
      _
    // Predicated region
    $region10: #{fwd.1} parent=1 // pred_check
      _
    $region11: #{fwd.1} parent=1 // pred_check_branch
      %47 = sbr.rel (0) target = $region13
    $region12: #{fwd.1} parent=1 // pred_region
      %49 = vsyncadd [#allocation6], 0
      %s50 = sshll.u32 %s2, 4
      %s51 = int_to_ptr.hbm [resolvable:$true] %s50
      %s52 = sshll.u32 [#allocation7], 4
      %s53 = int_to_ptr.vmem [resolvable:$true] %s52
      %58 = dma.hbm_to_vmem [thread:$0]  %s51, 2048, %s53, [#allocation6], 256, 256, 16
    $region13: #{fwd.1} parent=1 // pred_fallthru
      _
    // Predicated region
    $region14: #{fwd.1} parent=1 // pred_check
      _
    $region15: #{fwd.1} parent=1 // pred_check_branch
      %60 = sbr.rel (0) target = $region17
    $region16: #{fwd.1} parent=1 // pred_region
      %62 = vsyncadd [#allocation9], 0
      %s63 = sshll.u32 %s3, 4
      %s64 = int_to_ptr.hbm [resolvable:$true] %s63
      %s65 = sshll.u32 [#allocation8], 4
      %s66 = int_to_ptr.vmem [resolvable:$true] %s65
      %71 = dma.hbm_to_vmem [thread:$0]  %s64, 512, %s66, [#allocation9], 64, 64, 4
    $region17: #{fwd.1} parent=1 // pred_fallthru
      _
    // Predicated region
    $region18: #{fwd.1} parent=1 // pred_check
      _
    $region19: #{fwd.1} parent=1 // pred_check_branch
      %73 = sbr.rel (0) target = $region21
    $region20: #{fwd.1} parent=1 // pred_region
      %75 = vsyncadd [#allocation9], 0
      %s76 = sshll.u32 %s4, 4
      %s77 = int_to_ptr.hbm [resolvable:$true] %s76
      %s78 = sshll.u32 [#allocation10], 4
      %s79 = int_to_ptr.vmem [resolvable:$true] %s78
      %84 = dma.hbm_to_vmem [thread:$0]  %s77, 512, %s79, [#allocation9], 64, 64, 4
    $region21: #{fwd.1} parent=1 // pred_fallthru
      _
    // Predicated region
    $region22: #{fwd.1} parent=1 // pred_check
      _
    $region23: #{fwd.1} parent=1 // pred_check_branch
      %86 = sbr.rel (0) target = $region25
    $region24: #{fwd.1} parent=1 // pred_region
      %88 = vsyncadd [#allocation12], 0
      %s89 = sshll.u32 %s5, 4
      %s90 = int_to_ptr.hbm [resolvable:$true] %s89
      %s91 = sshll.u32 [#allocation11], 4
      %s92 = int_to_ptr.vmem [resolvable:$true] %s91
      %97 = dma.hbm_to_vmem [thread:$0]  %s90, 512, %s92, [#allocation12], 64, 64, 4
    $region25: #{fwd.1} parent=1 // pred_fallthru
      _
    // Predicated region
    $region26: #{fwd.1} parent=1 // pred_check
      _
    $region27: #{fwd.1} parent=1 // pred_check_branch
      %99 = sbr.rel (0) target = $region29
    $region28: #{fwd.1} parent=1 // pred_region
      %101 = vsyncadd [#allocation12], 0
      %s102 = sshll.u32 %s6, 4
      %s103 = int_to_ptr.hbm [resolvable:$true] %s102
      %s104 = sshll.u32 [#allocation13], 4
      %s105 = int_to_ptr.vmem [resolvable:$true] %s104
      %110 = dma.hbm_to_vmem [thread:$0]  %s103, 1024, %s105, [#allocation12], 64, 64, 4
    $region29: #{fwd.1} parent=1 // pred_fallthru
      _
    // Predicated region
    $region30: #{fwd.1} parent=1 // pred_check
      _
    $region31: #{fwd.1} parent=1 // pred_check_branch
      %112 = sbr.rel (0) target = $region33
    $region32: #{fwd.1} parent=1 // pred_region
      %114 = vsyncadd [#allocation15], 0
      %s115 = sshll.u32 %s7, 4
      %s116 = int_to_ptr.hbm [resolvable:$true] %s115
      %s117 = sshll.u32 [#allocation14], 4
      %s118 = int_to_ptr.vmem [resolvable:$true] %s117
      %123 = dma.hbm_to_vmem [thread:$0]  %s116, 256, %s118, [#allocation15], 128, 128, 8
    $region33: #{fwd.1} parent=1 // pred_fallthru
      _
    // Predicated region
    $region34: #{fwd.1} parent=1 // pred_check
      _
    $region35: #{fwd.1} parent=1 // pred_check_branch
      %125 = sbr.rel (0) target = $region37
    $region36: #{fwd.1} parent=1 // pred_region
      %127 = vsyncadd [#allocation15], 0
      %s128 = sshll.u32 %s8, 4
      %s129 = int_to_ptr.hbm [resolvable:$true] %s128
      %s130 = sshll.u32 [#allocation16], 4
      %s131 = int_to_ptr.vmem [resolvable:$true] %s130
      %136 = dma.hbm_to_vmem [thread:$0]  %s129, 640, %s131, [#allocation15], 128, 128, 8
    $region37: #{fwd.1} parent=1 // pred_fallthru
      _
    // Predicated region
    $region38: #{fwd.1} parent=1 // pred_check
      _
    $region39: #{fwd.1} parent=1 // pred_check_branch
      %138 = sbr.rel (0) target = $region41
    $region40: #{fwd.1} parent=1 // pred_region
      %140 = dma.done [#allocation3], 256
    $region41: #{fwd.1} parent=1 // pred_fallthru
      _
    // Predicated region
    $region42: #{fwd.1} parent=1 // pred_check
      _
    $region43: #{fwd.1} parent=1 // pred_check_branch
      %142 = sbr.rel (0) target = $region45
    $region44: #{fwd.1} parent=1 // pred_region
      %144 = dma.done [#allocation6], 256
    $region45: #{fwd.1} parent=1 // pred_fallthru
      _
    // Predicated region
    $region46: #{fwd.1} parent=1 // pred_check
      _
    $region47: #{fwd.1} parent=1 // pred_check_branch
      %146 = sbr.rel (0) target = $region49
    $region48: #{fwd.1} parent=1 // pred_region
      %148 = dma.done [#allocation6], 2048
    $region49: #{fwd.1} parent=1 // pred_fallthru
      _
    // Predicated region
    $region50: #{fwd.1} parent=1 // pred_check
      _
    $region51: #{fwd.1} parent=1 // pred_check_branch
      %150 = sbr.rel (0) target = $region53
    $region52: #{fwd.1} parent=1 // pred_region
      %152 = dma.done [#allocation9], 512
    $region53: #{fwd.1} parent=1 // pred_fallthru
      _
    // Predicated region
    $region54: #{fwd.1} parent=1 // pred_check
      _
    $region55: #{fwd.1} parent=1 // pred_check_branch
      %154 = sbr.rel (0) target = $region57
    $region56: #{fwd.1} parent=1 // pred_region
      %156 = dma.done [#allocation9], 512
    $region57: #{fwd.1} parent=1 // pred_fallthru
      _
    // Predicated region
    $region58: #{fwd.1} parent=1 // pred_check
      _
    $region59: #{fwd.1} parent=1 // pred_check_branch
      %158 = sbr.rel (0) target = $region61
    $region60: #{fwd.1} parent=1 // pred_region
      %160 = dma.done [#allocation12], 512
    $region61: #{fwd.1} parent=1 // pred_fallthru
      _
    // Predicated region
    $region62: #{fwd.1} parent=1 // pred_check
      _
    $region63: #{fwd.1} parent=1 // pred_check_branch
      %162 = sbr.rel (0) target = $region65
    $region64: #{fwd.1} parent=1 // pred_region
      %164 = dma.done [#allocation12], 1024
    $region65: #{fwd.1} parent=1 // pred_fallthru
      _
    // Predicated region
    $region66: #{fwd.1} parent=1 // pred_check
      _
    $region67: #{fwd.1} parent=1 // pred_check_branch
      %166 = sbr.rel (0) target = $region69
    $region68: #{fwd.1} parent=1 // pred_region
      %168 = dma.done [#allocation15], 256
    $region69: #{fwd.1} parent=1 // pred_fallthru
      _
    // Predicated region
    $region70: #{fwd.1} parent=1 // pred_check
      _
    $region71: #{fwd.1} parent=1 // pred_check_branch
      %170 = sbr.rel (0) target = $region73
    $region72: #{fwd.1} parent=1 // pred_region
      %172 = dma.done [#allocation15], 640
    $region73: #{fwd.1} parent=1 // pred_fallthru
      _
    %v174 = vld [vmem:[#allocation5] sm:$0xff]
    %v175 = vld [vmem:[#allocation5 + $0x8] sm:$0xff]
    %v176 = vld [vmem:[#allocation7] sm:$0xff]
    %v177 = vld [vmem:[#allocation7 + $0x8] sm:$0xff]
    %v178 = vld [vmem:[#allocation7 + $0x10] sm:$0xff]
    %v179 = vld [vmem:[#allocation7 + $0x18] sm:$0xff]
    %v180 = vld [vmem:[#allocation7 + $0x20] sm:$0xff]
    %v181 = vld [vmem:[#allocation7 + $0x28] sm:$0xff]
    %v182 = vld [vmem:[#allocation7 + $0x30] sm:$0xff]
    %v183 = vld [vmem:[#allocation7 + $0x38] sm:$0xff]
    %v184 = vld [vmem:[#allocation7 + $0x40] sm:$0xff]
    %v185 = vld [vmem:[#allocation7 + $0x48] sm:$0xff]
    %v186 = vld [vmem:[#allocation7 + $0x50] sm:$0xff]
    %v187 = vld [vmem:[#allocation7 + $0x58] sm:$0xff]
    %v188 = vld [vmem:[#allocation7 + $0x60] sm:$0xff]
    %v189 = vld [vmem:[#allocation7 + $0x68] sm:$0xff]
    %v190 = vld [vmem:[#allocation7 + $0x70] sm:$0xff]
    %v191 = vld [vmem:[#allocation7 + $0x78] sm:$0xff]
    %v192 = vpack.c.bf16 %v175, %v174
    %v193 = vpack.c.bf16 %v179, %v177
    %v194 = vpack.c.bf16 %v183, %v181
    %v195 = vpack.c.bf16 %v187, %v185
    %v196 = vpack.c.bf16 %v191, %v189
    %v197 = vld [vmem:[#allocation2] sm:$0xff]
    %v198 = vld [vmem:[#allocation2 + $0x8] sm:$0xff]
    %v199 = vadd.f32 %v197, %v174
    %v200 = vadd.f32 %v198, %v175
    %v201 = vld [vmem:[#allocation14] sm:$0xff]
    %v202 = vpack.c.bf16 %v200, %v199
    %207 = vrot.lane.b32.xlu0 %v193, 96
    %v208 = vpop.permute.xlu0 %207
    %209 = vrot.lane.b32.xlu0 %v194, 96
    %v210 = vpop.permute.xlu0 %209
    %211 = vrot.lane.b32.xlu0 %v195, 96
    %v212 = vpop.permute.xlu0 %211
    %213 = vrot.lane.b32.xlu0 %v196, 96
    %v214 = vpop.permute.xlu0 %213
    %vm215 = vcmask 130048
    %v217 = vsel %vm215, %v208, 0
    %v220 = vsel %vm215, %v210, 0
    %v223 = vsel %vm215, %v212, 0
    %v226 = vsel %vm215, %v214, 0
    %228 = vmatpush.bf16.msra.mxu0 0
    %229 = vmatpush.bf16.msra.mxu0 0
    %230 = vmatpush.bf16.msra.mxu0 0
    %231 = vmatpush.bf16.msra.mxu0 0
    %232 = vmatpush.bf16.msra.mxu0 0
    %233 = vmatpush.bf16.msra.mxu0 0
    %234 = vmatpush.bf16.msra.mxu0 0
    %235 = vmatpush.bf16.msra.mxu0 %v202
    %236 = vmatmul.bf16.gmra.mxu0 %v217
    %v237 = vpop.f32.mrf.mxu0
    %v238 = vadd.f32 0.0, %v237
    %v239 = vpop.f32.mrf.mxu0
    %v240 = vadd.f32 0.0, %v239
    %241 = vmatmul.bf16.gmra.mxu0 %v220
    %v242 = vpop.f32.mrf.mxu0
    %v243 = vadd.f32 0.0, %v242
    %v244 = vpop.f32.mrf.mxu0
    %v245 = vadd.f32 0.0, %v244
    %246 = vmatmul.bf16.gmra.mxu0 %v223
    %v247 = vpop.f32.mrf.mxu0
    %v248 = vadd.f32 0.0, %v247
    %v249 = vpop.f32.mrf.mxu0
    %v250 = vadd.f32 0.0, %v249
    %251 = vmatmul.bf16.gmra.mxu0 %v226
    %v252 = vpop.f32.mrf.mxu0
    %v253 = vadd.f32 0.0, %v252
    %v254 = vpop.f32.mrf.mxu0
    %v255 = vadd.f32 0.0, %v254
    %256 = vdwg.mxu0
    %v257 = vpack.c.bf16 %v240, %v238
    %v258 = vpack.c.bf16 %v245, %v243
    %v259 = vpack.c.bf16 %v250, %v248
    %v260 = vpack.c.bf16 %v255, %v253
    %v261 = vld [vmem:[#allocation8] sm:$0xf]
    %v262 = vld [vmem:[#allocation8 + $0x4] sm:$0xf]
    %v263 = vld [vmem:[#allocation8 + $0x8] sm:$0xf]
    %v264 = vld [vmem:[#allocation8 + $0xc] sm:$0xf]
    %v265 = vperm.slane %v201, 0
    %v270 = vunpack.c.l.b16 %v261
    %v271 = vunpack.c.l.b16 %v262
    %v272 = vunpack.c.l.b16 %v263
    %v273 = vunpack.c.l.b16 %v264
    %v274 = vpack.c.b16 %v271, %v270
    %v275 = vpack.c.b16 %v273, %v272
    %vm278 = vcmask 261120
    %v280 = vsel %vm278, %v257, 0
    %v283 = vsel %vm278, %v258, 0
    %v286 = vsel %vm278, %v259, 0
    %v289 = vsel %vm278, %v260, 0
    %291 = vmatpush.bf16.msra.mxu0 0
    %292 = vmatpush.bf16.msra.mxu0 0
    %293 = vmatpush.bf16.msra.mxu0 0
    %294 = vmatpush.bf16.msra.mxu0 0
    %295 = vmatpush.bf16.msra.mxu0 0
    %296 = vmatpush.bf16.msra.mxu0 0
    %297 = vmatpush.bf16.msra.mxu0 %v275
    %298 = vmatpush.bf16.msra.mxu0 %v274
    %299 = vmatmul.bf16.gmra.mxu0 %v280
    %v300 = vpop.f32.mrf.mxu0
    %v301 = vadd.f32 %v265, %v300
    %v302 = vpop.f32.mrf.mxu0
    %v303 = vadd.f32 %v265, %v302
    %304 = vmatmul.bf16.gmra.mxu0 %v283
    %v305 = vpop.f32.mrf.mxu0
    %v306 = vadd.f32 %v265, %v305
    %v307 = vpop.f32.mrf.mxu0
    %v308 = vadd.f32 %v265, %v307
    %309 = vmatmul.bf16.gmra.mxu0 %v286
    %v310 = vpop.f32.mrf.mxu0
    %v311 = vadd.f32 %v265, %v310
    %v312 = vpop.f32.mrf.mxu0
    %v313 = vadd.f32 %v265, %v312
    %314 = vmatmul.bf16.gmra.mxu0 %v289
    %v315 = vpop.f32.mrf.mxu0
    %v316 = vadd.f32 %v265, %v315
    %v317 = vpop.f32.mrf.mxu0
    %v318 = vadd.f32 %v265, %v317
    %319 = vdwg.mxu0
    %v320 = vmul.f32 %v301, %v176
    %v321 = vmul.f32 %v303, %v178
    %v322 = vmul.f32 %v306, %v180
    %v323 = vmul.f32 %v308, %v182
    %v324 = vmul.f32 %v311, %v184
    %v325 = vmul.f32 %v313, %v186
    %v326 = vmul.f32 %v316, %v188
    %v327 = vmul.f32 %v318, %v190
    %v328 = vpack.c.bf16 %v321, %v320
    %v329 = vpack.c.bf16 %v323, %v322
    %v330 = vpack.c.bf16 %v325, %v324
    %v331 = vpack.c.bf16 %v327, %v326
    %336 = vrot.lane.b32.xlu0 %v328, 96
    %v337 = vpop.permute.xlu0 %336
    %338 = vrot.lane.b32.xlu0 %v329, 96
    %v339 = vpop.permute.xlu0 %338
    %340 = vrot.lane.b32.xlu0 %v330, 96
    %v341 = vpop.permute.xlu0 %340
    %342 = vrot.lane.b32.xlu0 %v331, 96
    %v343 = vpop.permute.xlu0 %342
    %360 = vrot.lane.b32.xlu0 %v176, 32
    %v361 = vpop.permute.xlu0 %360
    %362 = vrot.lane.b32.xlu0 %v177, 32
    %v363 = vpop.permute.xlu0 %362
    %364 = vrot.lane.b32.xlu0 %v178, 32
    %v365 = vpop.permute.xlu0 %364
    %366 = vrot.lane.b32.xlu0 %v179, 32
    %v367 = vpop.permute.xlu0 %366
    %368 = vrot.lane.b32.xlu0 %v180, 32
    %v369 = vpop.permute.xlu0 %368
    %370 = vrot.lane.b32.xlu0 %v181, 32
    %v371 = vpop.permute.xlu0 %370
    %372 = vrot.lane.b32.xlu0 %v182, 32
    %v373 = vpop.permute.xlu0 %372
    %374 = vrot.lane.b32.xlu0 %v183, 32
    %v375 = vpop.permute.xlu0 %374
    %376 = vrot.lane.b32.xlu0 %v184, 32
    %v377 = vpop.permute.xlu0 %376
    %378 = vrot.lane.b32.xlu0 %v185, 32
    %v379 = vpop.permute.xlu0 %378
    %380 = vrot.lane.b32.xlu0 %v186, 32
    %v381 = vpop.permute.xlu0 %380
    %382 = vrot.lane.b32.xlu0 %v187, 32
    %v383 = vpop.permute.xlu0 %382
    %384 = vrot.lane.b32.xlu0 %v188, 32
    %v385 = vpop.permute.xlu0 %384
    %386 = vrot.lane.b32.xlu0 %v189, 32
    %v387 = vpop.permute.xlu0 %386
    %388 = vrot.lane.b32.xlu0 %v190, 32
    %v389 = vpop.permute.xlu0 %388
    %390 = vrot.lane.b32.xlu0 %v191, 32
    %v391 = vpop.permute.xlu0 %390
    %v392 = vsel %vm278, %v361, %v363
    %v393 = vsel %vm278, %v365, %v367
    %v394 = vsel %vm278, %v369, %v371
    %v395 = vsel %vm278, %v373, %v375
    %v396 = vsel %vm278, %v377, %v379
    %v397 = vsel %vm278, %v381, %v383
    %v398 = vsel %vm278, %v385, %v387
    %v399 = vsel %vm278, %v389, %v391
    %v409 = vsel %vm278, %v328, 0
    %v412 = vsel %vm278, %v329, 0
    %v415 = vsel %vm278, %v330, 0
    %v418 = vsel %vm278, %v331, 0
    %v421 = vsel %vm278, %v337, 0
    %v424 = vsel %vm278, %v339, 0
    %v427 = vsel %vm278, %v341, 0
    %v430 = vsel %vm278, %v343, 0
    %432 = vmatpush.bf16.xpose.msra.mxu0 0
    %433 = vmatpush.bf16.xpose.msra.mxu0 0
    %434 = vmatpush.bf16.xpose.msra.mxu0 0
    %435 = vmatpush.bf16.xpose.msra.mxu0 0
    %436 = vmatpush.bf16.xpose.msra.mxu0 %v430
    %437 = vmatpush.bf16.xpose.msra.mxu0 %v427
    %438 = vmatpush.bf16.xpose.msra.mxu0 %v424
    %439 = vmatpush.bf16.xpose.msra.mxu0 %v421
    %440 = vmatmul.bf16.gmra.mxu0 %v409
    %v441 = vpop.f32.mrf.mxu0
    %v442 = vadd.f32 %v392, %v441
    %v443 = vpop.f32.mrf.mxu0
    %v444 = vadd.f32 %v393, %v443
    %445 = vmatmul.bf16.gmra.mxu0 %v412
    %v446 = vpop.f32.mrf.mxu0
    %v447 = vadd.f32 %v394, %v446
    %v448 = vpop.f32.mrf.mxu0
    %v449 = vadd.f32 %v395, %v448
    %450 = vmatmul.bf16.gmra.mxu0 %v415
    %v451 = vpop.f32.mrf.mxu0
    %v452 = vadd.f32 %v396, %v451
    %v453 = vpop.f32.mrf.mxu0
    %v454 = vadd.f32 %v397, %v453
    %455 = vmatmul.bf16.gmra.mxu0 %v418
    %v456 = vpop.f32.mrf.mxu0
    %v457 = vadd.f32 %v398, %v456
    %v458 = vpop.f32.mrf.mxu0
    %v459 = vadd.f32 %v399, %v458
    %460 = vdwg.mxu0
    %vm461 = vcmask 523264
    %v462 = vsel %vm461, %v442, -inf
    %463 = vmax.xlane.f32.xlu0 %v462
    %v464 = vpop.xlane.xlu0 %463
    %v465 = vsel %vm461, %v444, -inf
    %466 = vmax.xlane.f32.xlu0 %v465
    %v467 = vpop.xlane.xlu0 %466
    %v468 = vsel %vm461, %v447, -inf
    %469 = vmax.xlane.f32.xlu0 %v468
    %v470 = vpop.xlane.xlu0 %469
    %v471 = vsel %vm461, %v449, -inf
    %472 = vmax.xlane.f32.xlu0 %v471
    %v473 = vpop.xlane.xlu0 %472
    %v474 = vsel %vm461, %v452, -inf
    %475 = vmax.xlane.f32.xlu0 %v474
    %v476 = vpop.xlane.xlu0 %475
    %v477 = vsel %vm461, %v454, -inf
    %478 = vmax.xlane.f32.xlu0 %v477
    %v479 = vpop.xlane.xlu0 %478
    %v480 = vsel %vm461, %v457, -inf
    %481 = vmax.xlane.f32.xlu0 %v480
    %v482 = vpop.xlane.xlu0 %481
    %v483 = vsel %vm461, %v459, -inf
    %484 = vmax.xlane.f32.xlu0 %v483
    %v485 = vpop.xlane.xlu0 %484
    %v486 = vsub.f32 %v442, %v464
    %v487 = vsub.f32 %v444, %v467
    %v488 = vsub.f32 %v447, %v470
    %v489 = vsub.f32 %v449, %v473
    %v490 = vsub.f32 %v452, %v476
    %v491 = vsub.f32 %v454, %v479
    %v492 = vsub.f32 %v457, %v482
    %v493 = vsub.f32 %v459, %v485
    %v494 = vmul.f32 %v486, 1.442695
    %v495 = vpow.pop %v494
    %v496 = vmul.f32 %v487, 1.442695
    %v497 = vpow.pop %v496
    %v498 = vmul.f32 %v488, 1.442695
    %v499 = vpow.pop %v498
    %v500 = vmul.f32 %v489, 1.442695
    %v501 = vpow.pop %v500
    %v502 = vmul.f32 %v490, 1.442695
    %v503 = vpow.pop %v502
    %v504 = vmul.f32 %v491, 1.442695
    %v505 = vpow.pop %v504
    %v506 = vmul.f32 %v492, 1.442695
    %v507 = vpow.pop %v506
    %v508 = vmul.f32 %v493, 1.442695
    %v509 = vpow.pop %v508
    %v510 = vsel %vm461, %v495, 0.0
    %511 = vadd.xlane.f32.xlu0 %v510
    %v512 = vpop.xlane.xlu0 %511
    %v513 = vsel %vm461, %v497, 0.0
    %514 = vadd.xlane.f32.xlu0 %v513
    %v515 = vpop.xlane.xlu0 %514
    %v516 = vsel %vm461, %v499, 0.0
    %517 = vadd.xlane.f32.xlu0 %v516
    %v518 = vpop.xlane.xlu0 %517
    %v519 = vsel %vm461, %v501, 0.0
    %520 = vadd.xlane.f32.xlu0 %v519
    %v521 = vpop.xlane.xlu0 %520
    %v522 = vsel %vm461, %v503, 0.0
    %523 = vadd.xlane.f32.xlu0 %v522
    %v524 = vpop.xlane.xlu0 %523
    %v525 = vsel %vm461, %v505, 0.0
    %526 = vadd.xlane.f32.xlu0 %v525
    %v527 = vpop.xlane.xlu0 %526
    %v528 = vsel %vm461, %v507, 0.0
    %529 = vadd.xlane.f32.xlu0 %v528
    %v530 = vpop.xlane.xlu0 %529
    %v531 = vsel %vm461, %v509, 0.0
    %532 = vadd.xlane.f32.xlu0 %v531
    %v533 = vpop.xlane.xlu0 %532
    %v534 = vrcp.pop %v512
    %v535 = vrcp.pop %v515
    %v536 = vrcp.pop %v518
    %v537 = vrcp.pop %v521
    %v538 = vrcp.pop %v524
    %v539 = vrcp.pop %v527
    %v540 = vrcp.pop %v530
    %v541 = vrcp.pop %v533
    %v542 = vmul.f32 %v495, %v534
    %v543 = vmul.f32 %v497, %v535
    %v544 = vmul.f32 %v499, %v536
    %v545 = vmul.f32 %v501, %v537
    %v546 = vmul.f32 %v503, %v538
    %v547 = vmul.f32 %v505, %v539
    %v548 = vmul.f32 %v507, %v540
    %v549 = vmul.f32 %v509, %v541
    %v550 = vpack.c.bf16 %v543, %v542
    %v551 = vpack.c.bf16 %v545, %v544
    %v552 = vpack.c.bf16 %v547, %v546
    %v553 = vpack.c.bf16 %v549, %v548
    %554 = vrot.lane.b32.xlu0 %v328, 64
    %v555 = vpop.permute.xlu0 %554
    %556 = vrot.lane.b32.xlu0 %v329, 64
    %v557 = vpop.permute.xlu0 %556
    %558 = vrot.lane.b32.xlu0 %v330, 64
    %v559 = vpop.permute.xlu0 %558
    %560 = vrot.lane.b32.xlu0 %v331, 64
    %v561 = vpop.permute.xlu0 %560
    %v567 = vsel %vm461, %v550, 0
    %v570 = vsel %vm461, %v551, 0
    %v573 = vsel %vm461, %v552, 0
    %v576 = vsel %vm461, %v553, 0
    %578 = vmatpush.bf16.msra.mxu0 0
    %579 = vmatpush.bf16.msra.mxu0 0
    %580 = vmatpush.bf16.msra.mxu0 0
    %581 = vmatpush.bf16.msra.mxu0 0
    %582 = vmatpush.bf16.msra.mxu0 %v561
    %583 = vmatpush.bf16.msra.mxu0 %v559
    %584 = vmatpush.bf16.msra.mxu0 %v557
    %585 = vmatpush.bf16.msra.mxu0 %v555
    %586 = vmatmul.bf16.gmra.mxu0 %v567
    %v587 = vpop.f32.mrf.mxu0
    %v588 = vadd.f32 0.0, %v587
    %v589 = vpop.f32.mrf.mxu0
    %v590 = vadd.f32 0.0, %v589
    %591 = vmatmul.bf16.gmra.mxu0 %v570
    %v592 = vpop.f32.mrf.mxu0
    %v593 = vadd.f32 0.0, %v592
    %v594 = vpop.f32.mrf.mxu0
    %v595 = vadd.f32 0.0, %v594
    %596 = vmatmul.bf16.gmra.mxu0 %v573
    %v597 = vpop.f32.mrf.mxu0
    %v598 = vadd.f32 0.0, %v597
    %v599 = vpop.f32.mrf.mxu0
    %v600 = vadd.f32 0.0, %v599
    %601 = vmatmul.bf16.gmra.mxu0 %v576
    %v602 = vpop.f32.mrf.mxu0
    %v603 = vadd.f32 0.0, %v602
    %v604 = vpop.f32.mrf.mxu0
    %v605 = vadd.f32 0.0, %v604
    %606 = vdwg.mxu0
    %v607 = vpack.c.bf16 %v590, %v588
    %v608 = vpack.c.bf16 %v595, %v593
    %v609 = vpack.c.bf16 %v600, %v598
    %v610 = vpack.c.bf16 %v605, %v603
    %612 = vrot.lane.b32.xlu0 %v192, 96
    %v613 = vpop.permute.xlu0 %612
    %v615 = vsel %vm461, %v613, 0
    %617 = vmatpush.bf16.msra.mxu0 0
    %618 = vmatpush.bf16.msra.mxu0 0
    %619 = vmatpush.bf16.msra.mxu0 0
    %620 = vmatpush.bf16.msra.mxu0 0
    %621 = vmatpush.bf16.msra.mxu0 %v610
    %622 = vmatpush.bf16.msra.mxu0 %v609
    %623 = vmatpush.bf16.msra.mxu0 %v608
    %624 = vmatpush.bf16.msra.mxu0 %v607
    %625 = vmatmul.bf16.gmra.mxu0 %v615
    %v626 = vpop.f32.mrf.mxu0
    %v627 = vadd.f32 0.0, %v626
    %v628 = vpop.f32.mrf.mxu0
    %v629 = vadd.f32 0.0, %v628
    %630 = vdwg.mxu0
    %v631 = vpack.c.bf16 %v629, %v627
    %v632 = vld [vmem:[#allocation10] sm:$0xf]
    %v633 = vld [vmem:[#allocation10 + $0x4] sm:$0xf]
    %v634 = vld [vmem:[#allocation10 + $0x8] sm:$0xf]
    %v635 = vld [vmem:[#allocation10 + $0xc] sm:$0xf]
    %v636 = vperm.slane %v201, 1
    %v641 = vunpack.c.l.b16 %v632
    %v642 = vunpack.c.l.b16 %v633
    %v643 = vunpack.c.l.b16 %v634
    %v644 = vunpack.c.l.b16 %v635
    %v645 = vpack.c.b16 %v642, %v641
    %v646 = vpack.c.b16 %v644, %v643
    %v650 = vsel %vm278, %v631, 0
    %652 = vmatpush.bf16.msra.mxu0 0
    %653 = vmatpush.bf16.msra.mxu0 0
    %654 = vmatpush.bf16.msra.mxu0 0
    %655 = vmatpush.bf16.msra.mxu0 0
    %656 = vmatpush.bf16.msra.mxu0 0
    %657 = vmatpush.bf16.msra.mxu0 0
    %658 = vmatpush.bf16.msra.mxu0 %v646
    %659 = vmatpush.bf16.msra.mxu0 %v645
    %660 = vmatmul.bf16.gmra.mxu0 %v650
    %v661 = vpop.f32.mrf.mxu0
    %v662 = vadd.f32 %v636, %v661
    %v663 = vpop.f32.mrf.mxu0
    %v664 = vadd.f32 %v636, %v663
    %665 = vdwg.mxu0
    %v666 = vadd.f32 %v199, %v662
    %v667 = vadd.f32 %v200, %v664
    %v668 = vsel %vm278, %v666, 0.0
    %669 = vadd.xlane.f32.xlu0 %v668
    %v670 = vpop.xlane.xlu0 %669
    %v671 = vsel %vm278, %v667, 0.0
    %672 = vadd.xlane.f32.xlu0 %v671
    %v673 = vpop.xlane.xlu0 %672
    %v674 = vrcp.pop 32.0
    %v675 = vmul.f32 32.0, %v674
    %v676 = vsub.f32 1.0, %v675
    %v677 = vmul.f32 %v674, %v676
    %v678 = vadd.f32 %v674, %v677
    %vm679 = vweird.f32 %v674
    %v680 = vsel %vm679, %v674, %v678
    %v681 = vmul.f32 %v670, %v680
    %v682 = vmul.f32 %v673, %v680
    %v683 = vsub.f32 %v666, %v681
    %v684 = vsub.f32 %v667, %v682
    %v685 = vmul.f32 %v683, %v683
    %v686 = vmul.f32 %v684, %v684
    %v687 = vsel %vm278, %v685, 0.0
    %688 = vadd.xlane.f32.xlu0 %v687
    %v689 = vpop.xlane.xlu0 %688
    %v690 = vsel %vm278, %v686, 0.0
    %691 = vadd.xlane.f32.xlu0 %v690
    %v692 = vpop.xlane.xlu0 %691
    %v693 = vmul.f32 %v689, %v680
    %v694 = vmul.f32 %v692, %v680
    %v695 = vadd.f32 %v693, 1e-05
    %v696 = vadd.f32 %v694, 1e-05
    %v697 = vrsqrt.pop %v695
    %v698 = vmul.f32 %v697, %v695
    %v699 = vmul.f32 %v698, %v697
    %v700 = vmul.f32 0.5, %v699
    %v701 = vsub.f32 1.5, %v700
    %v702 = vmul.f32 %v697, %v701
    %vm703 = vweird.f32 %v695
    %vm704 = vweird.f32 %v697
    %vm705 = vmor %vm703, %vm704
    %v706 = vsel %vm705, %v697, %v702
    %v707 = vrsqrt.pop %v696
    %v708 = vmul.f32 %v707, %v696
    %v709 = vmul.f32 %v708, %v707
    %v710 = vmul.f32 0.5, %v709
    %v711 = vsub.f32 1.5, %v710
    %v712 = vmul.f32 %v707, %v711
    %vm713 = vweird.f32 %v696
    %vm714 = vweird.f32 %v707
    %vm715 = vmor %vm713, %vm714
    %v716 = vsel %vm715, %v707, %v712
    %v717 = vmul.f32 %v683, %v706
    %v718 = vmul.f32 %v684, %v716
    %v719 = vperm.slane %v201, 2
    %v720 = vmul.f32 %v717, %v719
    %v721 = vmul.f32 %v718, %v719
    %v722 = vperm.slane %v201, 3
    %v723 = vadd.f32 %v720, %v722
    %v724 = vadd.f32 %v721, %v722
    %v725 = vpack.c.bf16 %v724, %v723
    %v726 = vld [vmem:[#allocation11] sm:$0xf]
    %v727 = vld [vmem:[#allocation11 + $0x4] sm:$0xf]
    %v728 = vld [vmem:[#allocation11 + $0x8] sm:$0xf]
    %v729 = vld [vmem:[#allocation11 + $0xc] sm:$0xf]
    %v730 = vperm.slane %v201, 4
    %v735 = vunpack.c.l.b16 %v726
    %v736 = vunpack.c.l.b16 %v727
    %v737 = vunpack.c.l.b16 %v728
    %v738 = vunpack.c.l.b16 %v729
    %v739 = vpack.c.b16 %v736, %v735
    %v740 = vpack.c.b16 %v738, %v737
    %v744 = vsel %vm278, %v725, 0
    %746 = vmatpush.bf16.msra.mxu0 0
    %747 = vmatpush.bf16.msra.mxu0 0
    %748 = vmatpush.bf16.msra.mxu0 0
    %749 = vmatpush.bf16.msra.mxu0 0
    %750 = vmatpush.bf16.msra.mxu0 0
    %751 = vmatpush.bf16.msra.mxu0 0
    %752 = vmatpush.bf16.msra.mxu0 %v740
    %753 = vmatpush.bf16.msra.mxu0 %v739
    %754 = vmatmul.bf16.gmra.mxu0 %v744
    %v755 = vpop.f32.mrf.mxu0
    %v756 = vadd.f32 %v730, %v755
    %v757 = vpop.f32.mrf.mxu0
    %v758 = vadd.f32 %v730, %v757
    %759 = vdwg.mxu0
    %v760 = vmax.f32 %v756, 0.0
    %v761 = vmax.f32 %v758, 0.0
    %v762 = vpack.c.bf16 %v761, %v760
    %v763 = vld [vmem:[#allocation13] sm:$0xf]
    %v764 = vld [vmem:[#allocation13 + $0x4] sm:$0xf]
    %v765 = vld [vmem:[#allocation13 + $0x8] sm:$0xf]
    %v766 = vld [vmem:[#allocation13 + $0xc] sm:$0xf]
    %v767 = vld [vmem:[#allocation13 + $0x10] sm:$0xf]
    %v768 = vld [vmem:[#allocation13 + $0x14] sm:$0xf]
    %v769 = vld [vmem:[#allocation13 + $0x18] sm:$0xf]
    %v770 = vld [vmem:[#allocation13 + $0x1c] sm:$0xf]
    %v771 = vperm.slane %v201, 5
    %v780 = vunpack.c.l.b16 %v763
    %v781 = vunpack.c.l.b16 %v764
    %v782 = vunpack.c.l.b16 %v765
    %v783 = vunpack.c.l.b16 %v766
    %v784 = vunpack.c.l.b16 %v767
    %v785 = vunpack.c.l.b16 %v768
    %v786 = vunpack.c.l.b16 %v769
    %v787 = vunpack.c.l.b16 %v770
    %v788 = vpack.c.b16 %v781, %v780
    %v789 = vpack.c.b16 %v783, %v782
    %v790 = vpack.c.b16 %v785, %v784
    %v791 = vpack.c.b16 %v787, %v786
    %v797 = vsel %vm461, %v762, 0
    %799 = vmatpush.bf16.msra.mxu0 0
    %800 = vmatpush.bf16.msra.mxu0 0
    %801 = vmatpush.bf16.msra.mxu0 0
    %802 = vmatpush.bf16.msra.mxu0 0
    %803 = vmatpush.bf16.msra.mxu0 %v791
    %804 = vmatpush.bf16.msra.mxu0 %v790
    %805 = vmatpush.bf16.msra.mxu0 %v789
    %806 = vmatpush.bf16.msra.mxu0 %v788
    %807 = vmatmul.bf16.gmra.mxu0 %v797
    %v808 = vpop.f32.mrf.mxu0
    %v809 = vadd.f32 %v771, %v808
    %v810 = vpop.f32.mrf.mxu0
    %v811 = vadd.f32 %v771, %v810
    %812 = vdwg.mxu0
    %v813 = vadd.f32 %v723, %v809
    %v814 = vadd.f32 %v724, %v811
    %v815 = vsel %vm278, %v813, 0.0
    %816 = vadd.xlane.f32.xlu0 %v815
    %v817 = vpop.xlane.xlu0 %816
    %v818 = vsel %vm278, %v814, 0.0
    %819 = vadd.xlane.f32.xlu0 %v818
    %v820 = vpop.xlane.xlu0 %819
    %v821 = vmul.f32 %v817, %v680
    %v822 = vmul.f32 %v820, %v680
    %v823 = vsub.f32 %v813, %v821
    %v824 = vsub.f32 %v814, %v822
    %v825 = vmul.f32 %v823, %v823
    %v826 = vmul.f32 %v824, %v824
    %v827 = vsel %vm278, %v825, 0.0
    %828 = vadd.xlane.f32.xlu0 %v827
    %v829 = vpop.xlane.xlu0 %828
    %v830 = vsel %vm278, %v826, 0.0
    %831 = vadd.xlane.f32.xlu0 %v830
    %v832 = vpop.xlane.xlu0 %831
    %v833 = vmul.f32 %v829, %v680
    %v834 = vmul.f32 %v832, %v680
    %v835 = vadd.f32 %v833, 1e-05
    %v836 = vadd.f32 %v834, 1e-05
    %v837 = vrsqrt.pop %v835
    %v838 = vmul.f32 %v837, %v835
    %v839 = vmul.f32 %v838, %v837
    %v840 = vmul.f32 0.5, %v839
    %v841 = vsub.f32 1.5, %v840
    %v842 = vmul.f32 %v837, %v841
    %vm843 = vweird.f32 %v835
    %vm844 = vweird.f32 %v837
    %vm845 = vmor %vm843, %vm844
    %v846 = vsel %vm845, %v837, %v842
    %v847 = vrsqrt.pop %v836
    %v848 = vmul.f32 %v847, %v836
    %v849 = vmul.f32 %v848, %v847
    %v850 = vmul.f32 0.5, %v849
    %v851 = vsub.f32 1.5, %v850
    %v852 = vmul.f32 %v847, %v851
    %vm853 = vweird.f32 %v836
    %vm854 = vweird.f32 %v847
    %vm855 = vmor %vm853, %vm854
    %v856 = vsel %vm855, %v847, %v852
    %v857 = vmul.f32 %v823, %v846
    %v858 = vmul.f32 %v824, %v856
    %v859 = vperm.slane %v201, 6
    %v860 = vmul.f32 %v857, %v859
    %v861 = vmul.f32 %v858, %v859
    %v862 = vperm.slane %v201, 7
    %v863 = vadd.f32 %v860, %v862
    %v864 = vadd.f32 %v861, %v862
    %s865 = scalar_lea.vmem [#allocation14], 8
    %v866 = vld [vmem:[%s865] sm:$0xff]
    %v867 = vpack.c.bf16 %v864, %v863
    %868 = vmatpush.bf16.msra.mxu0 0
    %869 = vmatpush.bf16.msra.mxu0 0
    %870 = vmatpush.bf16.msra.mxu0 0
    %871 = vmatpush.bf16.msra.mxu0 0
    %872 = vmatpush.bf16.msra.mxu0 0
    %873 = vmatpush.bf16.msra.mxu0 0
    %874 = vmatpush.bf16.msra.mxu0 0
    %875 = vmatpush.bf16.msra.mxu0 %v867
    %876 = vmatmul.bf16.gmra.mxu0 %v217
    %v877 = vpop.f32.mrf.mxu0
    %v878 = vadd.f32 0.0, %v877
    %v879 = vpop.f32.mrf.mxu0
    %v880 = vadd.f32 0.0, %v879
    %881 = vmatmul.bf16.gmra.mxu0 %v220
    %v882 = vpop.f32.mrf.mxu0
    %v883 = vadd.f32 0.0, %v882
    %v884 = vpop.f32.mrf.mxu0
    %v885 = vadd.f32 0.0, %v884
    %886 = vmatmul.bf16.gmra.mxu0 %v223
    %v887 = vpop.f32.mrf.mxu0
    %v888 = vadd.f32 0.0, %v887
    %v889 = vpop.f32.mrf.mxu0
    %v890 = vadd.f32 0.0, %v889
    %891 = vmatmul.bf16.gmra.mxu0 %v226
    %v892 = vpop.f32.mrf.mxu0
    %v893 = vadd.f32 0.0, %v892
    %v894 = vpop.f32.mrf.mxu0
    %v895 = vadd.f32 0.0, %v894
    %896 = vdwg.mxu0
    %v897 = vpack.c.bf16 %v880, %v878
    %v898 = vpack.c.bf16 %v885, %v883
    %v899 = vpack.c.bf16 %v890, %v888
    %v900 = vpack.c.bf16 %v895, %v893
    %s901 = scalar_lea.vmem [#allocation8], 16
    %v902 = vld [vmem:[%s901] sm:$0xf]
    %v903 = vld [vmem:[%s901 + $0x4] sm:$0xf]
    %v904 = vld [vmem:[%s901 + $0x8] sm:$0xf]
    %v905 = vld [vmem:[%s901 + $0xc] sm:$0xf]
    %v906 = vperm.slane %v866, 0
    %v911 = vunpack.c.l.b16 %v902
    %v912 = vunpack.c.l.b16 %v903
    %v913 = vunpack.c.l.b16 %v904
    %v914 = vunpack.c.l.b16 %v905
    %v915 = vpack.c.b16 %v912, %v911
    %v916 = vpack.c.b16 %v914, %v913
    %v920 = vsel %vm278, %v897, 0
    %v923 = vsel %vm278, %v898, 0
    %v926 = vsel %vm278, %v899, 0
    %v929 = vsel %vm278, %v900, 0
    %931 = vmatpush.bf16.msra.mxu0 0
    %932 = vmatpush.bf16.msra.mxu0 0
    %933 = vmatpush.bf16.msra.mxu0 0
    %934 = vmatpush.bf16.msra.mxu0 0
    %935 = vmatpush.bf16.msra.mxu0 0
    %936 = vmatpush.bf16.msra.mxu0 0
    %937 = vmatpush.bf16.msra.mxu0 %v916
    %938 = vmatpush.bf16.msra.mxu0 %v915
    %939 = vmatmul.bf16.gmra.mxu0 %v920
    %v940 = vpop.f32.mrf.mxu0
    %v941 = vadd.f32 %v906, %v940
    %v942 = vpop.f32.mrf.mxu0
    %v943 = vadd.f32 %v906, %v942
    %944 = vmatmul.bf16.gmra.mxu0 %v923
    %v945 = vpop.f32.mrf.mxu0
    %v946 = vadd.f32 %v906, %v945
    %v947 = vpop.f32.mrf.mxu0
    %v948 = vadd.f32 %v906, %v947
    %949 = vmatmul.bf16.gmra.mxu0 %v926
    %v950 = vpop.f32.mrf.mxu0
    %v951 = vadd.f32 %v906, %v950
    %v952 = vpop.f32.mrf.mxu0
    %v953 = vadd.f32 %v906, %v952
    %954 = vmatmul.bf16.gmra.mxu0 %v929
    %v955 = vpop.f32.mrf.mxu0
    %v956 = vadd.f32 %v906, %v955
    %v957 = vpop.f32.mrf.mxu0
    %v958 = vadd.f32 %v906, %v957
    %959 = vdwg.mxu0
    %v960 = vmul.f32 %v941, %v176
    %v961 = vmul.f32 %v943, %v178
    %v962 = vmul.f32 %v946, %v180
    %v963 = vmul.f32 %v948, %v182
    %v964 = vmul.f32 %v951, %v184
    %v965 = vmul.f32 %v953, %v186
    %v966 = vmul.f32 %v956, %v188
    %v967 = vmul.f32 %v958, %v190
    %v968 = vpack.c.bf16 %v961, %v960
    %v969 = vpack.c.bf16 %v963, %v962
    %v970 = vpack.c.bf16 %v965, %v964
    %v971 = vpack.c.bf16 %v967, %v966
    %976 = vrot.lane.b32.xlu0 %v968, 96
    %v977 = vpop.permute.xlu0 %976
    %978 = vrot.lane.b32.xlu0 %v969, 96
    %v979 = vpop.permute.xlu0 %978
    %980 = vrot.lane.b32.xlu0 %v970, 96
    %v981 = vpop.permute.xlu0 %980
    %982 = vrot.lane.b32.xlu0 %v971, 96
    %v983 = vpop.permute.xlu0 %982
    %v985 = vsel %vm278, %v968, 0
    %v988 = vsel %vm278, %v969, 0
    %v991 = vsel %vm278, %v970, 0
    %v994 = vsel %vm278, %v971, 0
    %v997 = vsel %vm278, %v977, 0
    %v1000 = vsel %vm278, %v979, 0
    %v1003 = vsel %vm278, %v981, 0
    %v1006 = vsel %vm278, %v983, 0
    %1008 = vmatpush.bf16.xpose.msra.mxu0 0
    %1009 = vmatpush.bf16.xpose.msra.mxu0 0
    %1010 = vmatpush.bf16.xpose.msra.mxu0 0
    %1011 = vmatpush.bf16.xpose.msra.mxu0 0
    %1012 = vmatpush.bf16.xpose.msra.mxu0 %v1006
    %1013 = vmatpush.bf16.xpose.msra.mxu0 %v1003
    %1014 = vmatpush.bf16.xpose.msra.mxu0 %v1000
    %1015 = vmatpush.bf16.xpose.msra.mxu0 %v997
    %1016 = vmatmul.bf16.gmra.mxu0 %v985
    %v1017 = vpop.f32.mrf.mxu0
    %v1018 = vadd.f32 %v392, %v1017
    %v1019 = vpop.f32.mrf.mxu0
    %v1020 = vadd.f32 %v393, %v1019
    %1021 = vmatmul.bf16.gmra.mxu0 %v988
    %v1022 = vpop.f32.mrf.mxu0
    %v1023 = vadd.f32 %v394, %v1022
    %v1024 = vpop.f32.mrf.mxu0
    %v1025 = vadd.f32 %v395, %v1024
    %1026 = vmatmul.bf16.gmra.mxu0 %v991
    %v1027 = vpop.f32.mrf.mxu0
    %v1028 = vadd.f32 %v396, %v1027
    %v1029 = vpop.f32.mrf.mxu0
    %v1030 = vadd.f32 %v397, %v1029
    %1031 = vmatmul.bf16.gmra.mxu0 %v994
    %v1032 = vpop.f32.mrf.mxu0
    %v1033 = vadd.f32 %v398, %v1032
    %v1034 = vpop.f32.mrf.mxu0
    %v1035 = vadd.f32 %v399, %v1034
    %1036 = vdwg.mxu0
    %v1037 = vsel %vm461, %v1018, -inf
    %1038 = vmax.xlane.f32.xlu0 %v1037
    %v1039 = vpop.xlane.xlu0 %1038
    %v1040 = vsel %vm461, %v1020, -inf
    %1041 = vmax.xlane.f32.xlu0 %v1040
    %v1042 = vpop.xlane.xlu0 %1041
    %v1043 = vsel %vm461, %v1023, -inf
    %1044 = vmax.xlane.f32.xlu0 %v1043
    %v1045 = vpop.xlane.xlu0 %1044
    %v1046 = vsel %vm461, %v1025, -inf
    %1047 = vmax.xlane.f32.xlu0 %v1046
    %v1048 = vpop.xlane.xlu0 %1047
    %v1049 = vsel %vm461, %v1028, -inf
    %1050 = vmax.xlane.f32.xlu0 %v1049
    %v1051 = vpop.xlane.xlu0 %1050
    %v1052 = vsel %vm461, %v1030, -inf
    %1053 = vmax.xlane.f32.xlu0 %v1052
    %v1054 = vpop.xlane.xlu0 %1053
    %v1055 = vsel %vm461, %v1033, -inf
    %1056 = vmax.xlane.f32.xlu0 %v1055
    %v1057 = vpop.xlane.xlu0 %1056
    %v1058 = vsel %vm461, %v1035, -inf
    %1059 = vmax.xlane.f32.xlu0 %v1058
    %v1060 = vpop.xlane.xlu0 %1059
    %v1061 = vsub.f32 %v1018, %v1039
    %v1062 = vsub.f32 %v1020, %v1042
    %v1063 = vsub.f32 %v1023, %v1045
    %v1064 = vsub.f32 %v1025, %v1048
    %v1065 = vsub.f32 %v1028, %v1051
    %v1066 = vsub.f32 %v1030, %v1054
    %v1067 = vsub.f32 %v1033, %v1057
    %v1068 = vsub.f32 %v1035, %v1060
    %v1069 = vmul.f32 %v1061, 1.442695
    %v1070 = vpow.pop %v1069
    %v1071 = vmul.f32 %v1062, 1.442695
    %v1072 = vpow.pop %v1071
    %v1073 = vmul.f32 %v1063, 1.442695
    %v1074 = vpow.pop %v1073
    %v1075 = vmul.f32 %v1064, 1.442695
    %v1076 = vpow.pop %v1075
    %v1077 = vmul.f32 %v1065, 1.442695
    %v1078 = vpow.pop %v1077
    %v1079 = vmul.f32 %v1066, 1.442695
    %v1080 = vpow.pop %v1079
    %v1081 = vmul.f32 %v1067, 1.442695
    %v1082 = vpow.pop %v1081
    %v1083 = vmul.f32 %v1068, 1.442695
    %v1084 = vpow.pop %v1083
    %v1085 = vsel %vm461, %v1070, 0.0
    %1086 = vadd.xlane.f32.xlu0 %v1085
    %v1087 = vpop.xlane.xlu0 %1086
    %v1088 = vsel %vm461, %v1072, 0.0
    %1089 = vadd.xlane.f32.xlu0 %v1088
    %v1090 = vpop.xlane.xlu0 %1089
    %v1091 = vsel %vm461, %v1074, 0.0
    %1092 = vadd.xlane.f32.xlu0 %v1091
    %v1093 = vpop.xlane.xlu0 %1092
    %v1094 = vsel %vm461, %v1076, 0.0
    %1095 = vadd.xlane.f32.xlu0 %v1094
    %v1096 = vpop.xlane.xlu0 %1095
    %v1097 = vsel %vm461, %v1078, 0.0
    %1098 = vadd.xlane.f32.xlu0 %v1097
    %v1099 = vpop.xlane.xlu0 %1098
    %v1100 = vsel %vm461, %v1080, 0.0
    %1101 = vadd.xlane.f32.xlu0 %v1100
    %v1102 = vpop.xlane.xlu0 %1101
    %v1103 = vsel %vm461, %v1082, 0.0
    %1104 = vadd.xlane.f32.xlu0 %v1103
    %v1105 = vpop.xlane.xlu0 %1104
    %v1106 = vsel %vm461, %v1084, 0.0
    %1107 = vadd.xlane.f32.xlu0 %v1106
    %v1108 = vpop.xlane.xlu0 %1107
    %v1109 = vrcp.pop %v1087
    %v1110 = vrcp.pop %v1090
    %v1111 = vrcp.pop %v1093
    %v1112 = vrcp.pop %v1096
    %v1113 = vrcp.pop %v1099
    %v1114 = vrcp.pop %v1102
    %v1115 = vrcp.pop %v1105
    %v1116 = vrcp.pop %v1108
    %v1117 = vmul.f32 %v1070, %v1109
    %v1118 = vmul.f32 %v1072, %v1110
    %v1119 = vmul.f32 %v1074, %v1111
    %v1120 = vmul.f32 %v1076, %v1112
    %v1121 = vmul.f32 %v1078, %v1113
    %v1122 = vmul.f32 %v1080, %v1114
    %v1123 = vmul.f32 %v1082, %v1115
    %v1124 = vmul.f32 %v1084, %v1116
    %v1125 = vpack.c.bf16 %v1118, %v1117
    %v1126 = vpack.c.bf16 %v1120, %v1119
    %v1127 = vpack.c.bf16 %v1122, %v1121
    %v1128 = vpack.c.bf16 %v1124, %v1123
    %1129 = vrot.lane.b32.xlu0 %v968, 64
    %v1130 = vpop.permute.xlu0 %1129
    %1131 = vrot.lane.b32.xlu0 %v969, 64
    %v1132 = vpop.permute.xlu0 %1131
    %1133 = vrot.lane.b32.xlu0 %v970, 64
    %v1134 = vpop.permute.xlu0 %1133
    %1135 = vrot.lane.b32.xlu0 %v971, 64
    %v1136 = vpop.permute.xlu0 %1135
    %v1142 = vsel %vm461, %v1125, 0
    %v1145 = vsel %vm461, %v1126, 0
    %v1148 = vsel %vm461, %v1127, 0
    %v1151 = vsel %vm461, %v1128, 0
    %1153 = vmatpush.bf16.msra.mxu0 0
    %1154 = vmatpush.bf16.msra.mxu0 0
    %1155 = vmatpush.bf16.msra.mxu0 0
    %1156 = vmatpush.bf16.msra.mxu0 0
    %1157 = vmatpush.bf16.msra.mxu0 %v1136
    %1158 = vmatpush.bf16.msra.mxu0 %v1134
    %1159 = vmatpush.bf16.msra.mxu0 %v1132
    %1160 = vmatpush.bf16.msra.mxu0 %v1130
    %1161 = vmatmul.bf16.gmra.mxu0 %v1142
    %v1162 = vpop.f32.mrf.mxu0
    %v1163 = vadd.f32 0.0, %v1162
    %v1164 = vpop.f32.mrf.mxu0
    %v1165 = vadd.f32 0.0, %v1164
    %1166 = vmatmul.bf16.gmra.mxu0 %v1145
    %v1167 = vpop.f32.mrf.mxu0
    %v1168 = vadd.f32 0.0, %v1167
    %v1169 = vpop.f32.mrf.mxu0
    %v1170 = vadd.f32 0.0, %v1169
    %1171 = vmatmul.bf16.gmra.mxu0 %v1148
    %v1172 = vpop.f32.mrf.mxu0
    %v1173 = vadd.f32 0.0, %v1172
    %v1174 = vpop.f32.mrf.mxu0
    %v1175 = vadd.f32 0.0, %v1174
    %1176 = vmatmul.bf16.gmra.mxu0 %v1151
    %v1177 = vpop.f32.mrf.mxu0
    %v1178 = vadd.f32 0.0, %v1177
    %v1179 = vpop.f32.mrf.mxu0
    %v1180 = vadd.f32 0.0, %v1179
    %1181 = vdwg.mxu0
    %v1182 = vpack.c.bf16 %v1165, %v1163
    %v1183 = vpack.c.bf16 %v1170, %v1168
    %v1184 = vpack.c.bf16 %v1175, %v1173
    %v1185 = vpack.c.bf16 %v1180, %v1178
    %1186 = vmatpush.bf16.msra.mxu0 0
    %1187 = vmatpush.bf16.msra.mxu0 0
    %1188 = vmatpush.bf16.msra.mxu0 0
    %1189 = vmatpush.bf16.msra.mxu0 0
    %1190 = vmatpush.bf16.msra.mxu0 %v1185
    %1191 = vmatpush.bf16.msra.mxu0 %v1184
    %1192 = vmatpush.bf16.msra.mxu0 %v1183
    %1193 = vmatpush.bf16.msra.mxu0 %v1182
    %1194 = vmatmul.bf16.gmra.mxu0 %v615
    %v1195 = vpop.f32.mrf.mxu0
    %v1196 = vadd.f32 0.0, %v1195
    %v1197 = vpop.f32.mrf.mxu0
    %v1198 = vadd.f32 0.0, %v1197
    %1199 = vdwg.mxu0
    %v1200 = vpack.c.bf16 %v1198, %v1196
    %s1201 = scalar_lea.vmem [#allocation10], 16
    %v1202 = vld [vmem:[%s1201] sm:$0xf]
    %v1203 = vld [vmem:[%s1201 + $0x4] sm:$0xf]
    %v1204 = vld [vmem:[%s1201 + $0x8] sm:$0xf]
    %v1205 = vld [vmem:[%s1201 + $0xc] sm:$0xf]
    %v1206 = vperm.slane %v866, 1
    %v1211 = vunpack.c.l.b16 %v1202
    %v1212 = vunpack.c.l.b16 %v1203
    %v1213 = vunpack.c.l.b16 %v1204
    %v1214 = vunpack.c.l.b16 %v1205
    %v1215 = vpack.c.b16 %v1212, %v1211
    %v1216 = vpack.c.b16 %v1214, %v1213
    %v1220 = vsel %vm278, %v1200, 0
    %1222 = vmatpush.bf16.msra.mxu0 0
    %1223 = vmatpush.bf16.msra.mxu0 0
    %1224 = vmatpush.bf16.msra.mxu0 0
    %1225 = vmatpush.bf16.msra.mxu0 0
    %1226 = vmatpush.bf16.msra.mxu0 0
    %1227 = vmatpush.bf16.msra.mxu0 0
    %1228 = vmatpush.bf16.msra.mxu0 %v1216
    %1229 = vmatpush.bf16.msra.mxu0 %v1215
    %1230 = vmatmul.bf16.gmra.mxu0 %v1220
    %v1231 = vpop.f32.mrf.mxu0
    %v1232 = vadd.f32 %v1206, %v1231
    %v1233 = vpop.f32.mrf.mxu0
    %v1234 = vadd.f32 %v1206, %v1233
    %1235 = vdwg.mxu0
    %v1236 = vadd.f32 %v863, %v1232
    %v1237 = vadd.f32 %v864, %v1234
    %v1238 = vsel %vm278, %v1236, 0.0
    %1239 = vadd.xlane.f32.xlu0 %v1238
    %v1240 = vpop.xlane.xlu0 %1239
    %v1241 = vsel %vm278, %v1237, 0.0
    %1242 = vadd.xlane.f32.xlu0 %v1241
    %v1243 = vpop.xlane.xlu0 %1242
    %v1244 = vmul.f32 %v1240, %v680
    %v1245 = vmul.f32 %v1243, %v680
    %v1246 = vsub.f32 %v1236, %v1244
    %v1247 = vsub.f32 %v1237, %v1245
    %v1248 = vmul.f32 %v1246, %v1246
    %v1249 = vmul.f32 %v1247, %v1247
    %v1250 = vsel %vm278, %v1248, 0.0
    %1251 = vadd.xlane.f32.xlu0 %v1250
    %v1252 = vpop.xlane.xlu0 %1251
    %v1253 = vsel %vm278, %v1249, 0.0
    %1254 = vadd.xlane.f32.xlu0 %v1253
    %v1255 = vpop.xlane.xlu0 %1254
    %v1256 = vmul.f32 %v1252, %v680
    %v1257 = vmul.f32 %v1255, %v680
    %v1258 = vadd.f32 %v1256, 1e-05
    %v1259 = vadd.f32 %v1257, 1e-05
    %v1260 = vrsqrt.pop %v1258
    %v1261 = vmul.f32 %v1260, %v1258
    %v1262 = vmul.f32 %v1261, %v1260
    %v1263 = vmul.f32 0.5, %v1262
    %v1264 = vsub.f32 1.5, %v1263
    %v1265 = vmul.f32 %v1260, %v1264
    %vm1266 = vweird.f32 %v1258
    %vm1267 = vweird.f32 %v1260
    %vm1268 = vmor %vm1266, %vm1267
    %v1269 = vsel %vm1268, %v1260, %v1265
    %v1270 = vrsqrt.pop %v1259
    %v1271 = vmul.f32 %v1270, %v1259
    %v1272 = vmul.f32 %v1271, %v1270
    %v1273 = vmul.f32 0.5, %v1272
    %v1274 = vsub.f32 1.5, %v1273
    %v1275 = vmul.f32 %v1270, %v1274
    %vm1276 = vweird.f32 %v1259
    %vm1277 = vweird.f32 %v1270
    %vm1278 = vmor %vm1276, %vm1277
    %v1279 = vsel %vm1278, %v1270, %v1275
    %v1280 = vmul.f32 %v1246, %v1269
    %v1281 = vmul.f32 %v1247, %v1279
    %v1282 = vperm.slane %v866, 2
    %v1283 = vmul.f32 %v1280, %v1282
    %v1284 = vmul.f32 %v1281, %v1282
    %v1285 = vperm.slane %v866, 3
    %v1286 = vadd.f32 %v1283, %v1285
    %v1287 = vadd.f32 %v1284, %v1285
    %v1288 = vpack.c.bf16 %v1287, %v1286
    %s1289 = scalar_lea.vmem [#allocation11], 16
    %v1290 = vld [vmem:[%s1289] sm:$0xf]
    %v1291 = vld [vmem:[%s1289 + $0x4] sm:$0xf]
    %v1292 = vld [vmem:[%s1289 + $0x8] sm:$0xf]
    %v1293 = vld [vmem:[%s1289 + $0xc] sm:$0xf]
    %v1294 = vperm.slane %v866, 4
    %v1299 = vunpack.c.l.b16 %v1290
    %v1300 = vunpack.c.l.b16 %v1291
    %v1301 = vunpack.c.l.b16 %v1292
    %v1302 = vunpack.c.l.b16 %v1293
    %v1303 = vpack.c.b16 %v1300, %v1299
    %v1304 = vpack.c.b16 %v1302, %v1301
    %v1308 = vsel %vm278, %v1288, 0
    %1310 = vmatpush.bf16.msra.mxu0 0
    %1311 = vmatpush.bf16.msra.mxu0 0
    %1312 = vmatpush.bf16.msra.mxu0 0
    %1313 = vmatpush.bf16.msra.mxu0 0
    %1314 = vmatpush.bf16.msra.mxu0 0
    %1315 = vmatpush.bf16.msra.mxu0 0
    %1316 = vmatpush.bf16.msra.mxu0 %v1304
    %1317 = vmatpush.bf16.msra.mxu0 %v1303
    %1318 = vmatmul.bf16.gmra.mxu0 %v1308
    %v1319 = vpop.f32.mrf.mxu0
    %v1320 = vadd.f32 %v1294, %v1319
    %v1321 = vpop.f32.mrf.mxu0
    %v1322 = vadd.f32 %v1294, %v1321
    %1323 = vdwg.mxu0
    %v1324 = vmax.f32 %v1320, 0.0
    %v1325 = vmax.f32 %v1322, 0.0
    %v1326 = vpack.c.bf16 %v1325, %v1324
    %s1327 = scalar_lea.vmem [#allocation13], 32
    %v1328 = vld [vmem:[%s1327] sm:$0xf]
    %v1329 = vld [vmem:[%s1327 + $0x4] sm:$0xf]
    %v1330 = vld [vmem:[%s1327 + $0x8] sm:$0xf]
    %v1331 = vld [vmem:[%s1327 + $0xc] sm:$0xf]
    %v1332 = vld [vmem:[%s1327 + $0x10] sm:$0xf]
    %v1333 = vld [vmem:[%s1327 + $0x14] sm:$0xf]
    %v1334 = vld [vmem:[%s1327 + $0x18] sm:$0xf]
    %v1335 = vld [vmem:[%s1327 + $0x1c] sm:$0xf]
    %v1336 = vperm.slane %v866, 5
    %v1345 = vunpack.c.l.b16 %v1328
    %v1346 = vunpack.c.l.b16 %v1329
    %v1347 = vunpack.c.l.b16 %v1330
    %v1348 = vunpack.c.l.b16 %v1331
    %v1349 = vunpack.c.l.b16 %v1332
    %v1350 = vunpack.c.l.b16 %v1333
    %v1351 = vunpack.c.l.b16 %v1334
    %v1352 = vunpack.c.l.b16 %v1335
    %v1353 = vpack.c.b16 %v1346, %v1345
    %v1354 = vpack.c.b16 %v1348, %v1347
    %v1355 = vpack.c.b16 %v1350, %v1349
    %v1356 = vpack.c.b16 %v1352, %v1351
    %v1362 = vsel %vm461, %v1326, 0
    %1364 = vmatpush.bf16.msra.mxu0 0
    %1365 = vmatpush.bf16.msra.mxu0 0
    %1366 = vmatpush.bf16.msra.mxu0 0
    %1367 = vmatpush.bf16.msra.mxu0 0
    %1368 = vmatpush.bf16.msra.mxu0 %v1356
    %1369 = vmatpush.bf16.msra.mxu0 %v1355
    %1370 = vmatpush.bf16.msra.mxu0 %v1354
    %1371 = vmatpush.bf16.msra.mxu0 %v1353
    %1372 = vmatmul.bf16.gmra.mxu0 %v1362
    %v1373 = vpop.f32.mrf.mxu0
    %v1374 = vadd.f32 %v1336, %v1373
    %v1375 = vpop.f32.mrf.mxu0
    %v1376 = vadd.f32 %v1336, %v1375
    %1377 = vdwg.mxu0
    %v1378 = vadd.f32 %v1286, %v1374
    %v1379 = vadd.f32 %v1287, %v1376
    %v1380 = vsel %vm278, %v1378, 0.0
    %1381 = vadd.xlane.f32.xlu0 %v1380
    %v1382 = vpop.xlane.xlu0 %1381
    %v1383 = vsel %vm278, %v1379, 0.0
    %1384 = vadd.xlane.f32.xlu0 %v1383
    %v1385 = vpop.xlane.xlu0 %1384
    %v1386 = vmul.f32 %v1382, %v680
    %v1387 = vmul.f32 %v1385, %v680
    %v1388 = vsub.f32 %v1378, %v1386
    %v1389 = vsub.f32 %v1379, %v1387
    %v1390 = vmul.f32 %v1388, %v1388
    %v1391 = vmul.f32 %v1389, %v1389
    %v1392 = vsel %vm278, %v1390, 0.0
    %1393 = vadd.xlane.f32.xlu0 %v1392
    %v1394 = vpop.xlane.xlu0 %1393
    %v1395 = vsel %vm278, %v1391, 0.0
    %1396 = vadd.xlane.f32.xlu0 %v1395
    %v1397 = vpop.xlane.xlu0 %1396
    %v1398 = vmul.f32 %v1394, %v680
    %v1399 = vmul.f32 %v1397, %v680
    %v1400 = vadd.f32 %v1398, 1e-05
    %v1401 = vadd.f32 %v1399, 1e-05
    %v1402 = vrsqrt.pop %v1400
    %v1403 = vmul.f32 %v1402, %v1400
    %v1404 = vmul.f32 %v1403, %v1402
    %v1405 = vmul.f32 0.5, %v1404
    %v1406 = vsub.f32 1.5, %v1405
    %v1407 = vmul.f32 %v1402, %v1406
    %vm1408 = vweird.f32 %v1400
    %vm1409 = vweird.f32 %v1402
    %vm1410 = vmor %vm1408, %vm1409
    %v1411 = vsel %vm1410, %v1402, %v1407
    %v1412 = vrsqrt.pop %v1401
    %v1413 = vmul.f32 %v1412, %v1401
    %v1414 = vmul.f32 %v1413, %v1412
    %v1415 = vmul.f32 0.5, %v1414
    %v1416 = vsub.f32 1.5, %v1415
    %v1417 = vmul.f32 %v1412, %v1416
    %vm1418 = vweird.f32 %v1401
    %vm1419 = vweird.f32 %v1412
    %vm1420 = vmor %vm1418, %vm1419
    %v1421 = vsel %vm1420, %v1412, %v1417
    %v1422 = vmul.f32 %v1388, %v1411
    %v1423 = vmul.f32 %v1389, %v1421
    %v1424 = vperm.slane %v866, 6
    %v1425 = vmul.f32 %v1422, %v1424
    %v1426 = vmul.f32 %v1423, %v1424
    %v1427 = vperm.slane %v866, 7
    %v1428 = vadd.f32 %v1425, %v1427
    %v1429 = vadd.f32 %v1426, %v1427
    %1431 = vrot.lane.b32.xlu0 %v174, 32
    %v1432 = vpop.permute.xlu0 %1431
    %v1433 = vsel %vm215, %v1432, 0
    %1435 = vmatpush.msra.mxu0 0.0
    %1436 = vmatpush.msra.mxu0 0.0
    %1437 = vmatpush.msra.mxu0 0.0
    %1438 = vmatpush.msra.mxu0 0.0
    %1439 = vmatpush.msra.mxu0 0.0
    %1440 = vmatpush.msra.mxu0 0.0
    %1441 = vmatpush.msra.mxu0 0.0
    %1442 = vmatpush.msra.mxu0 0.0
    %1443 = vmatpush.msra.mxu0 0.0
    %1444 = vmatpush.msra.mxu0 0.0
    %1445 = vmatpush.msra.mxu0 0.0
    %1446 = vmatpush.msra.mxu0 0.0
    %1447 = vmatpush.msra.mxu0 0.0
    %1448 = vmatpush.msra.mxu0 0.0
    %1449 = vmatpush.msra.mxu0 %v1429
    %1450 = vmatpush.msra.mxu0 %v1428
    %1451 = vmatmul.f32.gmra.mxu0 %v1433
    %v1452 = vpop.f32.mrf.mxu0
    %v1453 = vadd.f32 0.0, %v1452
    %1454 = vdwg.mxu0
    %v1455 = vld [vmem:[#allocation16] sm:$0xff]
    %v1456 = vld [vmem:[#allocation16 + $0x8] sm:$0xff]
    %v1457 = vld [vmem:[#allocation16 + $0x10] sm:$0xff]
    %v1458 = vld [vmem:[#allocation16 + $0x18] sm:$0xff]
    %v1459 = vld [vmem:[#allocation16 + $0x20] sm:$0xff]
    %v1460 = vpack.c.bf16 %v1456, %v1455
    %v1461 = vpack.c.bf16 %v1458, %v1457
    %v1462 = vpack.c.bf16 %v1453, %v1453
    %v1463 = vperm.slane %v1459, 0
    %v1465 = vsel %vm278, %v1462, 0
    %1467 = vmatpush.bf16.msra.mxu0 0
    %1468 = vmatpush.bf16.msra.mxu0 0
    %1469 = vmatpush.bf16.msra.mxu0 0
    %1470 = vmatpush.bf16.msra.mxu0 0
    %1471 = vmatpush.bf16.msra.mxu0 0
    %1472 = vmatpush.bf16.msra.mxu0 0
    %1473 = vmatpush.bf16.msra.mxu0 %v1461
    %1474 = vmatpush.bf16.msra.mxu0 %v1460
    %1475 = vmatmul.bf16.gmra.mxu0 %v1465
    %v1476 = vpop.f32.mrf.mxu0
    %v1477 = vadd.f32 %v1463, %v1476
    %v1478 = vpop.f32.mrf.mxu0
    %1479 = vdwg.mxu0
    %1480 = vst [vmem:[#allocation17] sm:$0xff] %v1477
    // Predicated region
    $region74: #{fwd.1} parent=1 // pred_check
      _
    $region75: #{fwd.1} parent=1 // pred_check_branch
      %1482 = sbr.rel (0) target = $region77
    $region76: #{fwd.1} parent=1 // pred_region
      %1484 = vsyncadd [#allocation4], 0
      %s1486 = sshll.u32 [#allocation17], 4
      %s1487 = int_to_ptr.vmem [resolvable:$true] %s1486
      %s1488 = sshll.u32 %s9, 4
      %s1489 = int_to_ptr.hbm [resolvable:$true] %s1488
      %1491 = dma.vmem_to_hbm [thread:$0]  %s1487, 128, %s1489, [#allocation4]
    $region77: #{fwd.1} parent=1 // pred_fallthru
      _
    // Predicated region
    $region78: #{fwd.1} parent=1 // pred_check
      _
    $region79: #{fwd.1} parent=1 // pred_check_branch
      %1493 = sbr.rel (0) target = $region81
    $region80: #{fwd.1} parent=1 // pred_region
      %1495 = dma.done [#allocation4], 128
    $region81: #{fwd.1} parent=1 // pred_fallthru
      _
    %1496 = vsyncpa [#allocation3], 1
    %1497 = vsyncpa [#allocation6], 1
    %1498 = vsyncpa [#allocation9], 1
    %1499 = vsyncpa [#allocation12], 1
    %1500 = vsyncpa [#allocation15], 1
    %1501 = vsyncpa [#allocation4], 1

</llo_original>
